<compile_context>
chip_gen: v5e
topology: v5e:2x2
jax: 0.10.0
libtpu: 0.0.40
codegen_flags: <defaults>
</compile_context>

<pallas_src>
import functools

import jax
import jax.numpy as jnp
from jax.experimental import pallas as pl
from jax.experimental.pallas import tpu as pltpu

LANES = 128


def _round_up(x, m):
    return (x + m - 1) // m * m


def _pad_to(x, shape):
    return jnp.pad(x, [(0, t - s) for s, t in zip(x.shape, shape)])


# ----------------------------- Pallas kernels -------------------------------

def _conv_relu_pool_kernel(p_ref, w_ref, b_ref, o_ref, *, m):
    """One batch image: conv (as matmul) + bias + ReLU + 2x2/2 max-pool.

    p_ref: [4*m, Kp] bf16  im2col rows, pool-group major (g, ph, pw)
    w_ref: [Kp, 128] bf16  weights, out-channels zero-padded to 128 lanes
    b_ref: [1, 128]  f32
    o_ref: [m, 128]  bf16  pooled NHWC output (channels in lanes)
    """
    acc = jnp.dot(p_ref[...], w_ref[...], preferred_element_type=jnp.float32)
    acc = jnp.maximum(acc + b_ref[...], 0.0)          # bias + ReLU in f32
    pooled = jnp.maximum(
        jnp.maximum(acc[0 * m:1 * m], acc[1 * m:2 * m]),
        jnp.maximum(acc[2 * m:3 * m], acc[3 * m:4 * m]),
    )
    o_ref[...] = pooled.astype(o_ref.dtype)


def _fc3_kernel(x_ref, w1_ref, b1_ref, w2_ref, b2_ref, w3_ref, b3_ref, o_ref):
    """fc1+ReLU -> fc2+ReLU -> fc3, fused. Feature dims zero-padded to 128 lanes."""
    h = jnp.dot(x_ref[...], w1_ref[...], preferred_element_type=jnp.float32)
    h = jnp.maximum(h + b1_ref[...], 0.0)
    h = jnp.dot(h.astype(jnp.bfloat16), w2_ref[...], preferred_element_type=jnp.float32)
    h = jnp.maximum(h + b2_ref[...], 0.0)
    h = jnp.dot(h.astype(jnp.bfloat16), w3_ref[...], preferred_element_type=jnp.float32)
    o_ref[...] = h + b3_ref[...]


# ------------------------------ JAX glue -------------------------------------

def im2col_pool_grouped(x_nhwc, kh, kw):
    """x: [B,H,W,C] -> ([B, 4*Hp*Wp, C*kh*kw], Hp, Wp).

    Rows are ordered (pool_group, ph, pw) with pool_group = 2*dh + dw covering conv
    output pixel (2*ph+dh, 2*pw+dw).  Feature order is c*(kh*kw) + ki*kw + kj, matching
    the PyTorch weight flattening w.reshape(O, C*kh*kw)."""
    B, H, W, C = x_nhwc.shape
    Ho, Wo = H - kh + 1, W - kw + 1
    Hp, Wp = Ho // 2, Wo // 2
    cols = [x_nhwc[:, i:i + Ho, j:j + Wo, :] for i in range(kh) for j in range(kw)]
    p = jnp.stack(cols, axis=-1)                      # [B, Ho, Wo, C, kh*kw]
    p = p.reshape(B, Ho, Wo, C * kh * kw)
    groups = [p[:, dh::2, dw::2, :] for dh in (0, 1) for dw in (0, 1)]
    g = jnp.stack(groups, axis=1)                     # [B, 4, Hp, Wp, K]
    return g.reshape(B, 4 * Hp * Wp, C * kh * kw), Hp, Wp


def conv_relu_pool(x_nhwc, w_mat, b_row, *, kh=5, kw=5):
    """Fused valid conv (stride 1) + bias + ReLU + 2x2/2 max-pool.

    x_nhwc: [B,H,W,C] bf16; w_mat: [Kp,128] bf16 (pre-packed); b_row: [1,128] f32.
    Returns ([B, Hp*Wp, 128] bf16 pooled NHWC output with padded channels, Hp, Wp)."""
    B = x_nhwc.shape[0]
    patches, Hp, Wp = im2col_pool_grouped(x_nhwc, kh, kw)
    Kp = w_mat.shape[0]
    if Kp > patches.shape[-1]:
        patches = _pad_to(patches, (B, patches.shape[1], Kp))
    patches = patches.astype(jnp.bfloat16)
    m = Hp * Wp
    out = pl.pallas_call(
        functools.partial(_conv_relu_pool_kernel, m=m),
        out_shape=jax.ShapeDtypeStruct((B, m, LANES), jnp.bfloat16),
        grid=(B,),
        in_specs=[
            pl.BlockSpec((None, 4 * m, Kp), lambda b: (b, 0, 0)),
            pl.BlockSpec((Kp, LANES), lambda b: (0, 0)),
            pl.BlockSpec((1, LANES), lambda b: (0, 0)),
        ],
        out_specs=pl.BlockSpec((None, m, LANES), lambda b: (b, 0, 0)),
        compiler_params=pltpu.CompilerParams(dimension_semantics=("parallel",)),
    )(patches, w_mat, b_row)
    return out, Hp, Wp


def fc_block(feats, params):
    """feats: [B, 2048] bf16 (conv2 pooled [B, hw=16, c_pad=128] flattened)."""
    B, K = feats.shape
    tb = 256 if B >= 256 else _round_up(B, 8)
    Bp = _round_up(B, tb)
    if Bp > B:
        feats = _pad_to(feats, (Bp, K))
    out = pl.pallas_call(
        _fc3_kernel,
        out_shape=jax.ShapeDtypeStruct((Bp, LANES), jnp.float32),
        grid=(Bp // tb,),
        in_specs=[
            pl.BlockSpec((tb, K), lambda i: (i, 0)),
            pl.BlockSpec((K, LANES), lambda i: (0, 0)),
            pl.BlockSpec((1, LANES), lambda i: (0, 0)),
            pl.BlockSpec((LANES, LANES), lambda i: (0, 0)),
            pl.BlockSpec((1, LANES), lambda i: (0, 0)),
            pl.BlockSpec((LANES, LANES), lambda i: (0, 0)),
            pl.BlockSpec((1, LANES), lambda i: (0, 0)),
        ],
        out_specs=pl.BlockSpec((tb, LANES), lambda i: (i, 0)),
        compiler_params=pltpu.CompilerParams(dimension_semantics=("parallel",)),
    )(feats, params["fc1_w"], params["fc1_b"], params["fc2_w"], params["fc2_b"],
      params["fc3_w"], params["fc3_b"])
    return out[:B, :10]


# ------------------------------ Parameters -----------------------------------

def init_params(key):
    """PyTorch-style uniform init, then packed ONCE into the kernel layouts
    (pre-transposed [K,128], zero-padded, bf16 MXU operands, f32 biases)."""
    ks = jax.random.split(key, 10)

    def uniform(k, shape, fan_in):
        bound = 1.0 / (fan_in ** 0.5)
        return jax.random.uniform(k, shape, jnp.float32, -bound, bound)

    conv1_w = uniform(ks[0], (6, 1, 5, 5), 25)
    conv1_b = uniform(ks[1], (6,), 25)
    conv2_w = uniform(ks[2], (16, 6, 5, 5), 150)
    conv2_b = uniform(ks[3], (16,), 150)
    fc1_w = uniform(ks[4], (120, 256), 256)
    fc1_b = uniform(ks[5], (120,), 256)
    fc2_w = uniform(ks[6], (84, 120), 120)
    fc2_b = uniform(ks[7], (84,), 120)
    fc3_w = uniform(ks[8], (10, 84), 84)
    fc3_b = uniform(ks[9], (10,), 84)

    # conv1: [6,1,5,5] -> [25 -> 32, 128]   (feature = ki*5+kj, out-ch in lanes)
    c1 = _pad_to(conv1_w.reshape(6, 25).T, (32, LANES)).astype(jnp.bfloat16)
    # conv2: [16,6,5,5] -> [8*25 = 200, 128] (feature = c*25 + ki*5+kj, c padded 6->8)
    c2 = conv2_w.reshape(16, 6, 25).transpose(1, 2, 0)                 # [c, k, o]
    c2 = _pad_to(c2, (8, 25, LANES)).reshape(8 * 25, LANES).astype(jnp.bfloat16)
    # fc1: [120, 256] -> [16*128 = 2048, 128]; row index = hw*128 + c, so it consumes the
    # conv2 pooled output directly in its padded NHWC layout (no activation reorder).
    f1 = fc1_w.reshape(120, 16, 16).transpose(2, 1, 0)                 # [hw, c, o]
    f1 = _pad_to(f1, (16, LANES, LANES)).reshape(16 * LANES, LANES).astype(jnp.bfloat16)
    f2 = _pad_to(fc2_w.T, (LANES, LANES)).astype(jnp.bfloat16)
    f3 = _pad_to(fc3_w.T, (LANES, LANES)).astype(jnp.bfloat16)

    return {
        "conv1_w": c1, "conv1_b": _pad_to(conv1_b.reshape(1, 6), (1, LANES)),
        "conv2_w": c2, "conv2_b": _pad_to(conv2_b.reshape(1, 16), (1, LANES)),
        "fc1_w": f1, "fc1_b": _pad_to(fc1_b.reshape(1, 120), (1, LANES)),
        "fc2_w": f2, "fc2_b": _pad_to(fc2_b.reshape(1, 84), (1, LANES)),
        "fc3_w": f3, "fc3_b": _pad_to(fc3_b.reshape(1, 10), (1, LANES)),
    }


# ------------------------------ Forward ---------------------------------------

@jax.jit
def convnet_forward(params, x):
    """x: [B, 1, 28, 28] NCHW f32 (matches the PyTorch module). Returns [B, 10] f32."""
    B = x.shape[0]
    x = x.astype(jnp.bfloat16).transpose(0, 2, 3, 1)                 # NHWC [B,28,28,1]
    h1, Hp1, Wp1 = conv_relu_pool(x, params["conv1_w"], params["conv1_b"])   # [B,144,128]
    x2 = h1.reshape(B, Hp1, Wp1, LANES)[:, :, :, :8]                 # [B,12,12,8] (ch 6,7 = 0)
    h2, Hp2, Wp2 = conv_relu_pool(x2, params["conv2_w"], params["conv2_b"])  # [B,16,128]
    feats = h2.reshape(B, Hp2 * Wp2 * LANES)                         # [B, 2048] bf16
    return fc_block(feats, params)                                   # [B, 10] f32


if __name__ == "__main__":
    key = jax.random.PRNGKey(0)
    pkey, xkey = jax.random.split(key)
    params = init_params(pkey)
    # Input must be 28x28 single-channel so that fc1 sees 16*4*4 features.
    x = jax.random.normal(xkey, (2, 1, 28, 28), dtype=jnp.float32)
    out = convnet_forward(params, x)
    out = jax.block_until_ready(out)
    assert out.shape == (2, 10) and out.dtype == jnp.float32
    assert bool(jnp.all(jnp.isfinite(out)))
    print("KERNEL_OK")
</pallas_src>

<mosaic_0001>
module attributes {stable_mosaic.version = 11 : i64} {
  func.func @_conv_relu_pool_kernel(%arg0: i32, %arg1: memref<1x576x32xbf16, #tpu.memory_space<vmem>>, %arg2: memref<32x128xbf16, #tpu.memory_space<vmem>>, %arg3: memref<1x128xf32, #tpu.memory_space<vmem>>, %arg4: memref<1x144x128xbf16, #tpu.memory_space<vmem>>) attributes {dimension_semantics = [#tpu.dimension_semantics<parallel>], iteration_bounds = array<i64: 2>, scalar_prefetch = 0 : i64, scratch_operands = 0 : i64, tpu.core_type = #tpu.core_type<tc>, window_params = [{transform_indices = @transform_0, window_bounds = array<i64: 1, 576, 32>}, {pipeline_mode = #tpu.pipeline_mode<synchronous>, transform_indices = @transform_1, window_bounds = array<i64: 32, 128>}, {pipeline_mode = #tpu.pipeline_mode<synchronous>, transform_indices = @transform_2, window_bounds = array<i64: 1, 128>}, {transform_indices = @transform_3, window_bounds = array<i64: 1, 144, 128>}]} {
    %c0 = arith.constant 0 : index
    %c0_0 = arith.constant 0 : index
    %c0_1 = arith.constant 0 : index
    %0 = vector.load %arg1[%c0, %c0_0, %c0_1] : memref<1x576x32xbf16, #tpu.memory_space<vmem>>, vector<1x576x32xbf16>
    %1 = vector.shape_cast %0 : vector<1x576x32xbf16> to vector<576x32xbf16>
    %c0_2 = arith.constant 0 : index
    %c0_3 = arith.constant 0 : index
    %2 = vector.load %arg2[%c0_2, %c0_3] : memref<32x128xbf16, #tpu.memory_space<vmem>>, vector<32x128xbf16>
    %cst = arith.constant dense<0.000000e+00> : vector<576x128xf32>
    %3 = tpu.matmul %1, %2, %cst {dimension_numbers = #tpu.dot_dimension_numbers<[1], [0], [0], [1], [0, 0, 1, 1], [], []>} : vector<576x32xbf16>, vector<32x128xbf16>, vector<576x128xf32> -> vector<576x128xf32>
    %c0_4 = arith.constant 0 : index
    %c0_5 = arith.constant 0 : index
    %4 = vector.load %arg3[%c0_4, %c0_5] : memref<1x128xf32, #tpu.memory_space<vmem>>, vector<1x128xf32>
    %5 = vector.broadcast %4 : vector<1x128xf32> to vector<576x128xf32>
    %6 = arith.addf %3, %5 : vector<576x128xf32>
    %cst_6 = arith.constant 0.000000e+00 : f32
    %7 = vector.broadcast %cst_6 : f32 to vector<576x128xf32>
    %8 = arith.maximumf %6, %7 : vector<576x128xf32>
    %9 = vector.extract_strided_slice %8 {offsets = [0, 0], sizes = [144, 128], strides = [1, 1]} : vector<576x128xf32> to vector<144x128xf32>
    %10 = vector.extract_strided_slice %8 {offsets = [144, 0], sizes = [144, 128], strides = [1, 1]} : vector<576x128xf32> to vector<144x128xf32>
    %11 = arith.maximumf %9, %10 : vector<144x128xf32>
    %12 = vector.extract_strided_slice %8 {offsets = [288, 0], sizes = [144, 128], strides = [1, 1]} : vector<576x128xf32> to vector<144x128xf32>
    %13 = vector.extract_strided_slice %8 {offsets = [432, 0], sizes = [144, 128], strides = [1, 1]} : vector<576x128xf32> to vector<144x128xf32>
    %14 = arith.maximumf %12, %13 : vector<144x128xf32>
    %15 = arith.maximumf %11, %14 : vector<144x128xf32>
    %16 = arith.truncf %15 : vector<144x128xf32> to vector<144x128xbf16>
    %c0_7 = arith.constant 0 : index
    %c0_8 = arith.constant 0 : index
    %c0_9 = arith.constant 0 : index
    %17 = vector.load %arg4[%c0_7, %c0_8, %c0_9] : memref<1x144x128xbf16, #tpu.memory_space<vmem>>, vector<1x144x128xbf16>
    %18 = vector.shape_cast %17 : vector<1x144x128xbf16> to vector<144x128xbf16>
    %19 = vector.shape_cast %16 : vector<144x128xbf16> to vector<1x144x128xbf16>
    tpu.vector_store %arg4[%c0_7, %c0_8, %c0_9], %19 {strides = array<i32>} : memref<1x144x128xbf16, #tpu.memory_space<vmem>>, vector<1x144x128xbf16>,
    return
  }
  func.func @transform_0(%arg0: i32) -> (i32, i32, i32) {
    %c0_i32 = arith.constant 0 : i32
    %c0_i32_0 = arith.constant 0 : i32
    %c0_i32_1 = arith.constant 0 : i32
    return %arg0, %c0_i32, %c0_i32_0 : i32, i32, i32
  }
  func.func @transform_1(%arg0: i32) -> (i32, i32) {
    %c0_i32 = arith.constant 0 : i32
    %c0_i32_0 = arith.constant 0 : i32
    %c0_i32_1 = arith.constant 0 : i32
    return %c0_i32, %c0_i32_0 : i32, i32
  }
  func.func @transform_2(%arg0: i32) -> (i32, i32) {
    %c0_i32 = arith.constant 0 : i32
    %c0_i32_0 = arith.constant 0 : i32
    %c0_i32_1 = arith.constant 0 : i32
    return %c0_i32, %c0_i32_0 : i32, i32
  }
  func.func @transform_3(%arg0: i32) -> (i32, i32, i32) {
    %c0_i32 = arith.constant 0 : i32
    %c0_i32_0 = arith.constant 0 : i32
    %c0_i32_1 = arith.constant 0 : i32
    return %arg0, %c0_i32, %c0_i32_0 : i32, i32, i32
  }
}

module attributes {stable_mosaic.version = 11 : i64} {
  func.func @_conv_relu_pool_kernel(%arg0: i32, %arg1: memref<1x64x200xbf16, #tpu.memory_space<vmem>>, %arg2: memref<200x128xbf16, #tpu.memory_space<vmem>>, %arg3: memref<1x128xf32, #tpu.memory_space<vmem>>, %arg4: memref<1x16x128xbf16, #tpu.memory_space<vmem>>) attributes {dimension_semantics = [#tpu.dimension_semantics<parallel>], iteration_bounds = array<i64: 2>, scalar_prefetch = 0 : i64, scratch_operands = 0 : i64, tpu.core_type = #tpu.core_type<tc>, window_params = [{transform_indices = @transform_0, window_bounds = array<i64: 1, 64, 200>}, {pipeline_mode = #tpu.pipeline_mode<synchronous>, transform_indices = @transform_1, window_bounds = array<i64: 200, 128>}, {pipeline_mode = #tpu.pipeline_mode<synchronous>, transform_indices = @transform_2, window_bounds = array<i64: 1, 128>}, {transform_indices = @transform_3, window_bounds = array<i64: 1, 16, 128>}]} {
    %c0 = arith.constant 0 : index
    %c0_0 = arith.constant 0 : index
    %c0_1 = arith.constant 0 : index
    %0 = vector.load %arg1[%c0, %c0_0, %c0_1] : memref<1x64x200xbf16, #tpu.memory_space<vmem>>, vector<1x64x200xbf16>
    %1 = vector.shape_cast %0 : vector<1x64x200xbf16> to vector<64x200xbf16>
    %c0_2 = arith.constant 0 : index
    %c0_3 = arith.constant 0 : index
    %2 = vector.load %arg2[%c0_2, %c0_3] : memref<200x128xbf16, #tpu.memory_space<vmem>>, vector<200x128xbf16>
    %cst = arith.constant dense<0.000000e+00> : vector<64x128xf32>
    %3 = tpu.matmul %1, %2, %cst {dimension_numbers = #tpu.dot_dimension_numbers<[1], [0], [0], [1], [0, 0, 1, 1], [], []>} : vector<64x200xbf16>, vector<200x128xbf16>, vector<64x128xf32> -> vector<64x128xf32>
    %c0_4 = arith.constant 0 : index
    %c0_5 = arith.constant 0 : index
    %4 = vector.load %arg3[%c0_4, %c0_5] : memref<1x128xf32, #tpu.memory_space<vmem>>, vector<1x128xf32>
    %5 = vector.broadcast %4 : vector<1x128xf32> to vector<64x128xf32>
    %6 = arith.addf %3, %5 : vector<64x128xf32>
    %cst_6 = arith.constant 0.000000e+00 : f32
    %7 = vector.broadcast %cst_6 : f32 to vector<64x128xf32>
    %8 = arith.maximumf %6, %7 : vector<64x128xf32>
    %9 = vector.extract_strided_slice %8 {offsets = [0, 0], sizes = [16, 128], strides = [1, 1]} : vector<64x128xf32> to vector<16x128xf32>
    %10 = vector.extract_strided_slice %8 {offsets = [16, 0], sizes = [16, 128], strides = [1, 1]} : vector<64x128xf32> to vector<16x128xf32>
    %11 = arith.maximumf %9, %10 : vector<16x128xf32>
    %12 = vector.extract_strided_slice %8 {offsets = [32, 0], sizes = [16, 128], strides = [1, 1]} : vector<64x128xf32> to vector<16x128xf32>
    %13 = vector.extract_strided_slice %8 {offsets = [48, 0], sizes = [16, 128], strides = [1, 1]} : vector<64x128xf32> to vector<16x128xf32>
    %14 = arith.maximumf %12, %13 : vector<16x128xf32>
    %15 = arith.maximumf %11, %14 : vector<16x128xf32>
    %16 = arith.truncf %15 : vector<16x128xf32> to vector<16x128xbf16>
    %c0_7 = arith.constant 0 : index
    %c0_8 = arith.constant 0 : index
    %c0_9 = arith.constant 0 : index
    %17 = vector.load %arg4[%c0_7, %c0_8, %c0_9] : memref<1x16x128xbf16, #tpu.memory_space<vmem>>, vector<1x16x128xbf16>
    %18 = vector.shape_cast %17 : vector<1x16x128xbf16> to vector<16x128xbf16>
    %19 = vector.shape_cast %16 : vector<16x128xbf16> to vector<1x16x128xbf16>
    tpu.vector_store %arg4[%c0_7, %c0_8, %c0_9], %19 {strides = array<i32>} : memref<1x16x128xbf16, #tpu.memory_space<vmem>>, vector<1x16x128xbf16>,
    return
  }
  func.func @transform_0(%arg0: i32) -> (i32, i32, i32) {
    %c0_i32 = arith.constant 0 : i32
    %c0_i32_0 = arith.constant 0 : i32
    %c0_i32_1 = arith.constant 0 : i32
    return %arg0, %c0_i32, %c0_i32_0 : i32, i32, i32
  }
  func.func @transform_1(%arg0: i32) -> (i32, i32) {
    %c0_i32 = arith.constant 0 : i32
    %c0_i32_0 = arith.constant 0 : i32
    %c0_i32_1 = arith.constant 0 : i32
    return %c0_i32, %c0_i32_0 : i32, i32
  }
  func.func @transform_2(%arg0: i32) -> (i32, i32) {
    %c0_i32 = arith.constant 0 : i32
    %c0_i32_0 = arith.constant 0 : i32
    %c0_i32_1 = arith.constant 0 : i32
    return %c0_i32, %c0_i32_0 : i32, i32
  }
  func.func @transform_3(%arg0: i32) -> (i32, i32, i32) {
    %c0_i32 = arith.constant 0 : i32
    %c0_i32_0 = arith.constant 0 : i32
    %c0_i32_1 = arith.constant 0 : i32
    return %arg0, %c0_i32, %c0_i32_0 : i32, i32, i32
  }
}

module attributes {stable_mosaic.version = 11 : i64} {
  func.func @_fc3_kernel(%arg0: i32, %arg1: memref<8x2048xbf16, #tpu.memory_space<vmem>>, %arg2: memref<2048x128xbf16, #tpu.memory_space<vmem>>, %arg3: memref<1x128xf32, #tpu.memory_space<vmem>>, %arg4: memref<128x128xbf16, #tpu.memory_space<vmem>>, %arg5: memref<1x128xf32, #tpu.memory_space<vmem>>, %arg6: memref<128x128xbf16, #tpu.memory_space<vmem>>, %arg7: memref<1x128xf32, #tpu.memory_space<vmem>>, %arg8: memref<8x128xf32, #tpu.memory_space<vmem>>) attributes {dimension_semantics = [#tpu.dimension_semantics<parallel>], iteration_bounds = array<i64: 1>, scalar_prefetch = 0 : i64, scratch_operands = 0 : i64, tpu.core_type = #tpu.core_type<tc>, window_params = [{transform_indices = @transform_0, window_bounds = array<i64: 8, 2048>}, {pipeline_mode = #tpu.pipeline_mode<synchronous>, transform_indices = @transform_1, window_bounds = array<i64: 2048, 128>}, {pipeline_mode = #tpu.pipeline_mode<synchronous>, transform_indices = @transform_2, window_bounds = array<i64: 1, 128>}, {pipeline_mode = #tpu.pipeline_mode<synchronous>, transform_indices = @transform_3, window_bounds = array<i64: 128, 128>}, {pipeline_mode = #tpu.pipeline_mode<synchronous>, transform_indices = @transform_4, window_bounds = array<i64: 1, 128>}, {pipeline_mode = #tpu.pipeline_mode<synchronous>, transform_indices = @transform_5, window_bounds = array<i64: 128, 128>}, {pipeline_mode = #tpu.pipeline_mode<synchronous>, transform_indices = @transform_6, window_bounds = array<i64: 1, 128>}, {transform_indices = @transform_7, window_bounds = array<i64: 8, 128>}]} {
    %c0 = arith.constant 0 : index
    %c0_0 = arith.constant 0 : index
    %0 = vector.load %arg1[%c0, %c0_0] : memref<8x2048xbf16, #tpu.memory_space<vmem>>, vector<8x2048xbf16>
    %c0_1 = arith.constant 0 : index
    %c0_2 = arith.constant 0 : index
    %1 = vector.load %arg2[%c0_1, %c0_2] : memref<2048x128xbf16, #tpu.memory_space<vmem>>, vector<2048x128xbf16>
    %cst = arith.constant dense<0.000000e+00> : vector<8x128xf32>
    %2 = tpu.matmul %0, %1, %cst {dimension_numbers = #tpu.dot_dimension_numbers<[1], [0], [0], [1], [0, 0, 1, 1], [], []>} : vector<8x2048xbf16>, vector<2048x128xbf16>, vector<8x128xf32> -> vector<8x128xf32>
    %c0_3 = arith.constant 0 : index
    %c0_4 = arith.constant 0 : index
    %3 = vector.load %arg3[%c0_3, %c0_4] : memref<1x128xf32, #tpu.memory_space<vmem>>, vector<1x128xf32>
    %4 = vector.broadcast %3 : vector<1x128xf32> to vector<8x128xf32>
    %5 = arith.addf %2, %4 : vector<8x128xf32>
    %cst_5 = arith.constant 0.000000e+00 : f32
    %6 = vector.broadcast %cst_5 : f32 to vector<8x128xf32>
    %7 = arith.maximumf %5, %6 : vector<8x128xf32>
    %8 = arith.truncf %7 : vector<8x128xf32> to vector<8x128xbf16>
    %c0_6 = arith.constant 0 : index
    %c0_7 = arith.constant 0 : index
    %9 = vector.load %arg4[%c0_6, %c0_7] : memref<128x128xbf16, #tpu.memory_space<vmem>>, vector<128x128xbf16>
    %cst_8 = arith.constant dense<0.000000e+00> : vector<8x128xf32>
    %10 = tpu.matmul %8, %9, %cst_8 {dimension_numbers = #tpu.dot_dimension_numbers<[1], [0], [0], [1], [0, 0, 1, 1], [], []>} : vector<8x128xbf16>, vector<128x128xbf16>, vector<8x128xf32> -> vector<8x128xf32>
    %c0_9 = arith.constant 0 : index
    %c0_10 = arith.constant 0 : index
    %11 = vector.load %arg5[%c0_9, %c0_10] : memref<1x128xf32, #tpu.memory_space<vmem>>, vector<1x128xf32>
    %12 = vector.broadcast %11 : vector<1x128xf32> to vector<8x128xf32>
    %13 = arith.addf %10, %12 : vector<8x128xf32>
    %cst_11 = arith.constant 0.000000e+00 : f32
    %14 = vector.broadcast %cst_11 : f32 to vector<8x128xf32>
    %15 = arith.maximumf %13, %14 : vector<8x128xf32>
    %16 = arith.truncf %15 : vector<8x128xf32> to vector<8x128xbf16>
    %c0_12 = arith.constant 0 : index
    %c0_13 = arith.constant 0 : index
    %17 = vector.load %arg6[%c0_12, %c0_13] : memref<128x128xbf16, #tpu.memory_space<vmem>>, vector<128x128xbf16>
    %cst_14 = arith.constant dense<0.000000e+00> : vector<8x128xf32>
    %18 = tpu.matmul %16, %17, %cst_14 {dimension_numbers = #tpu.dot_dimension_numbers<[1], [0], [0], [1], [0, 0, 1, 1], [], []>} : vector<8x128xbf16>, vector<128x128xbf16>, vector<8x128xf32> -> vector<8x128xf32>
    %c0_15 = arith.constant 0 : index
    %c0_16 = arith.constant 0 : index
    %19 = vector.load %arg7[%c0_15, %c0_16] : memref<1x128xf32, #tpu.memory_space<vmem>>, vector<1x128xf32>
    %20 = vector.broadcast %19 : vector<1x128xf32> to vector<8x128xf32>
    %21 = arith.addf %18, %20 : vector<8x128xf32>
    %c0_17 = arith.constant 0 : index
    %c0_18 = arith.constant 0 : index
    %22 = vector.load %arg8[%c0_17, %c0_18] : memref<8x128xf32, #tpu.memory_space<vmem>>, vector<8x128xf32>
    tpu.vector_store %arg8[%c0_17, %c0_18], %21 {strides = array<i32>} : memref<8x128xf32, #tpu.memory_space<vmem>>, vector<8x128xf32>,
    return
  }
  func.func @transform_0(%arg0: i32) -> (i32, i32) {
    %c0_i32 = arith.constant 0 : i32
    %c0_i32_0 = arith.constant 0 : i32
    return %arg0, %c0_i32 : i32, i32
  }
  func.func @transform_1(%arg0: i32) -> (i32, i32) {
    %c0_i32 = arith.constant 0 : i32
    %c0_i32_0 = arith.constant 0 : i32
    %c0_i32_1 = arith.constant 0 : i32
    return %c0_i32, %c0_i32_0 : i32, i32
  }
  func.func @transform_2(%arg0: i32) -> (i32, i32) {
    %c0_i32 = arith.constant 0 : i32
    %c0_i32_0 = arith.constant 0 : i32
    %c0_i32_1 = arith.constant 0 : i32
    return %c0_i32, %c0_i32_0 : i32, i32
  }
  func.func @transform_3(%arg0: i32) -> (i32, i32) {
    %c0_i32 = arith.constant 0 : i32
    %c0_i32_0 = arith.constant 0 : i32
    %c0_i32_1 = arith.constant 0 : i32
    return %c0_i32, %c0_i32_0 : i32, i32
  }
  func.func @transform_4(%arg0: i32) -> (i32, i32) {
    %c0_i32 = arith.constant 0 : i32
    %c0_i32_0 = arith.constant 0 : i32
    %c0_i32_1 = arith.constant 0 : i32
    return %c0_i32, %c0_i32_0 : i32, i32
  }
  func.func @transform_5(%arg0: i32) -> (i32, i32) {
    %c0_i32 = arith.constant 0 : i32
    %c0_i32_0 = arith.constant 0 : i32
    %c0_i32_1 = arith.constant 0 : i32
    return %c0_i32, %c0_i32_0 : i32, i32
  }
  func.func @transform_6(%arg0: i32) -> (i32, i32) {
    %c0_i32 = arith.constant 0 : i32
    %c0_i32_0 = arith.constant 0 : i32
    %c0_i32_1 = arith.constant 0 : i32
    return %c0_i32, %c0_i32_0 : i32, i32
  }
  func.func @transform_7(%arg0: i32) -> (i32, i32) {
    %c0_i32 = arith.constant 0 : i32
    %c0_i32_0 = arith.constant 0 : i32
    return %arg0, %c0_i32 : i32, i32
  }
}

</mosaic_0001>

<llo_original>
// kernel: convnet_forward.3
$region0: #{convnet_forward.3}
  #allocation0 [shape = 'u32[]', space=smem, size = 0x4, offset = 0x4, fixed_abs, tag = 'smem constant byte address 0x4 - core index']
  #allocation1 [shape = 'u32[72,128]{1,0:T(1,128)}', space=vmem, size = 0x9000, scoped, tag = 'internal scratch']
  %s0 = inlined_call_operand.vmem [shape: bf16[2,576,32], index: 0, kind: input, shape index: {}]
  %s1 = inlined_call_operand.vmem [shape: bf16[32,128], index: 1, kind: input, shape index: {}]
  %s2 = inlined_call_operand.vmem [shape: f32[1,128], index: 2, kind: input, shape index: {}]
  %s3 = inlined_call_operand.vmem [shape: bf16[2,144,128], index: 3, kind: output, shape index: {}]
  %s4 = sld [smem:[#allocation0]]
  $region45: #{convnet_forward.3} parent=0
    _
  %s6 = ssub.s32 1, %s4
  %s7 = scalar_select 0, %s6, %s4
  loop: start=0, step=1, limit=4
  $region2: #{convnet_forward.3} parent=0 // loop_pre_header
    _
  $region3: #{convnet_forward.3} parent=0 // loop_header
    %s9 = sphi 0, %s13
    %p10 = scmp.ge.s32.totalorder %s9, 4
    %s19 = sphi 0, %s21
    %s22 = sphi 0, %s19
    %s23 = sphi 0, %s22
    %s39 = sphi 0, %s23
    %s43 = sphi 0, %s43
    %s45 = sphi 0, %s43
    %s46 = sphi 0, %s45
    %s60 = sphi 0, %s46
    %s64 = sphi 0, %s64
    %s66 = sphi 0, %s64
    %s67 = sphi 0, %s66
    %s81 = sphi 0, %s67
    %s87 = sphi 0, %s89
    %s90 = sphi 0, %s87
    %s91 = sphi 0, %s90
    %s107 = sphi 0, %s91
  $region4: #{convnet_forward.3} parent=0 // loop_header_branch
    %12 = sbr.rel (%p10) target = $region8
  $region5: #{convnet_forward.3} parent=0 // loop_body
    %s14 = ssub.s32 %s9, 1
    %s15 = ssub.s32 %s9, 2
    %s16 = sadd.s32 %s9, 1
    %s17 = ssub.s32 %s9, %s16
    %p18 = scmp.eq.s32.totalorder %s17, 0
    %s20 = sadd.s32 %s19, 1
    %s21 = scalar_select %p18, %s19, %s20
    %p24 = pneg %p18
    %p25 = scmp.eq.s32.totalorder %s9, 1
    %p26 = por %p24, %p25
    %p27 = scmp.ne.s32.totalorder %s19, %s22
    %p28 = scmp.eq.s32.totalorder %s9, 0
    %p29 = por %p27, %p28
    %p30 = scmp.ne.s32.totalorder %s19, %s22
    %p31 = scmp.eq.s32.totalorder %s14, 1
    %p32 = por %p30, %p31
    %p33 = scmp.ne.s32.totalorder %s22, %s23
    %p34 = scmp.eq.s32.totalorder %s14, 0
    %p35 = por %p33, %p34
    %p36 = scmp.ne.s32.totalorder %s22, %s23
    %p37 = scmp.eq.s32.totalorder %s15, 1
    %p38 = por %p36, %p37
    %p40 = scmp.ne.s32.totalorder %s23, %s39
    %p41 = scmp.eq.s32.totalorder %s15, 0
    %p42 = por %p40, %p41
    %s44 = sadd.s32 %s43, 1
    %p47 = scmp.eq.s32.totalorder %s9, 1
    %p48 = scmp.ne.s32.totalorder %s43, %s45
    %p49 = scmp.eq.s32.totalorder %s9, 0
    %p50 = por %p48, %p49
    %p51 = scmp.ne.s32.totalorder %s43, %s45
    %p52 = scmp.eq.s32.totalorder %s14, 1
    %p53 = por %p51, %p52
    %p54 = scmp.ne.s32.totalorder %s45, %s46
    %p55 = scmp.eq.s32.totalorder %s14, 0
    %p56 = por %p54, %p55
    %p57 = scmp.ne.s32.totalorder %s45, %s46
    %p58 = scmp.eq.s32.totalorder %s15, 1
    %p59 = por %p57, %p58
    %p61 = scmp.ne.s32.totalorder %s46, %s60
    %p62 = scmp.eq.s32.totalorder %s15, 0
    %p63 = por %p61, %p62
    %s65 = sadd.s32 %s64, 1
    %p68 = scmp.eq.s32.totalorder %s9, 1
    %p69 = scmp.ne.s32.totalorder %s64, %s66
    %p70 = scmp.eq.s32.totalorder %s9, 0
    %p71 = por %p69, %p70
    %p72 = scmp.ne.s32.totalorder %s64, %s66
    %p73 = scmp.eq.s32.totalorder %s14, 1
    %p74 = por %p72, %p73
    %p75 = scmp.ne.s32.totalorder %s66, %s67
    %p76 = scmp.eq.s32.totalorder %s14, 0
    %p77 = por %p75, %p76
    %p78 = scmp.ne.s32.totalorder %s66, %s67
    %p79 = scmp.eq.s32.totalorder %s15, 1
    %p80 = por %p78, %p79
    %p82 = scmp.ne.s32.totalorder %s67, %s81
    %p83 = scmp.eq.s32.totalorder %s15, 0
    %p84 = por %p82, %p83
    %s85 = ssub.s32 %s9, %s16
    %p86 = scmp.eq.s32.totalorder %s85, 0
    %s88 = sadd.s32 %s87, 1
    %s89 = scalar_select %p86, %s87, %s88
    %p92 = pneg %p86
    %p93 = scmp.eq.s32.totalorder %s9, 1
    %p94 = por %p92, %p93
    %p95 = scmp.ne.s32.totalorder %s87, %s90
    %p96 = scmp.eq.s32.totalorder %s9, 0
    %p97 = por %p95, %p96
    %p98 = scmp.ne.s32.totalorder %s87, %s90
    %p99 = scmp.eq.s32.totalorder %s14, 1
    %p100 = por %p98, %p99
    %p101 = scmp.ne.s32.totalorder %s90, %s91
    %p102 = scmp.eq.s32.totalorder %s14, 0
    %p103 = por %p101, %p102
    %p104 = scmp.ne.s32.totalorder %s90, %s91
    %p105 = scmp.eq.s32.totalorder %s15, 1
    %p106 = por %p104, %p105
    %p108 = scmp.ne.s32.totalorder %s91, %s107
    %p109 = scmp.eq.s32.totalorder %s15, 0
    %p110 = por %p108, %p109
    %p111 = scmp.le.s32.totalorder 1, %s9
    %p112 = scmp.lt.s32.totalorder %s9, 3
    %p113 = pnand %p111, %p112
    %p114 = pneg %p113
    // Predicated region
    $region9: #{convnet_forward.3} parent=5 // pred_check
      _
    $region10: #{convnet_forward.3} parent=5 // pred_check_branch
      %116 = sbr.rel (%p113) target = $region12
    $region11: #{convnet_forward.3} parent=5 // pred_region
      %s117 = ssub.s32 %s9, 1
      // Predicated region
      $region13: #{convnet_forward.3} parent=11 // pred_check
        %p118 = pneg %p56
      $region14: #{convnet_forward.3} parent=11 // pred_check_branch
        %120 = sbr.rel (%p118) target = $region16
      $region15: #{convnet_forward.3} parent=11 // pred_region
        _
      $region16: #{convnet_forward.3} parent=11 // pred_fallthru
        _
      // Predicated region
      $region17: #{convnet_forward.3} parent=11 // pred_check
        %p121 = pneg %p77
      $region18: #{convnet_forward.3} parent=11 // pred_check_branch
        %123 = sbr.rel (%p121) target = $region20
      $region19: #{convnet_forward.3} parent=11 // pred_region
        _
      $region20: #{convnet_forward.3} parent=11 // pred_fallthru
        _
    $region12: #{convnet_forward.3} parent=5 // pred_fallthru
      _
    %p124 = scmp.lt.s32.totalorder %s9, 2
    // Predicated region
    $region21: #{convnet_forward.3} parent=5 // pred_check
      %p125 = pneg %p124
    $region22: #{convnet_forward.3} parent=5 // pred_check_branch
      %127 = sbr.rel (%p125) target = $region24
    $region23: #{convnet_forward.3} parent=5 // pred_region
      // Predicated region
      $region25: #{convnet_forward.3} parent=23 // pred_check
        %p128 = pneg %p29
      $region26: #{convnet_forward.3} parent=23 // pred_check_branch
        %130 = sbr.rel (%p128) target = $region28
      $region27: #{convnet_forward.3} parent=23 // pred_region
        %p131 = scmp.lt.s32.totalorder %s9, 1
        %s132 = scalar_select %p131, %s9, 1
        %s133 = smul.addr %s132, 72
        %s134 = smul.addr %s133, 4
        %s135 = scalar_lea.vmem %s0, %s134
      $region28: #{convnet_forward.3} parent=23 // pred_fallthru
        _
    $region24: #{convnet_forward.3} parent=5 // pred_fallthru
      _
    %p136 = scmp.le.s32.totalorder 1, %s9
    %p137 = scmp.lt.s32.totalorder %s9, 3
    %p138 = pnand %p136, %p137
    %p139 = pneg %p138
    // Predicated region
    $region29: #{convnet_forward.3} parent=5 // pred_check
      _
    $region30: #{convnet_forward.3} parent=5 // pred_check_branch
      %141 = sbr.rel (%p138) target = $region32
    $region31: #{convnet_forward.3} parent=5 // pred_region
      %s142 = ssub.s32 %s9, 1
      %p143 = scmp.lt.s32.totalorder %s14, 1
      %s144 = scalar_select %p143, %s14, 1
      %s145 = smul.addr %s144, 72
      %s146 = smul.addr %s145, 4
      %s147 = scalar_lea.vmem %s0, %s146
      %p148 = pneg %p35
      %p149 = pneg %p32
      %p150 = pneg %p56
      %p151 = pneg %p53
      %p152 = pneg %p77
      %p153 = pneg %p74
      %p154 = pneg %p103
      %p155 = pneg %p100
      %p156 = scmp.lt.s32.totalorder %s14, 1
      %s157 = scalar_select %p156, %s14, 1
      %s158 = smul.addr %s157, 18
      %s159 = smul.addr %s158, 4
      %s160 = scalar_lea.vmem %s3, %s159
      %p161 = scmp.lt.s32.totalorder %s14, 1
      %s162 = scalar_select %p161, %s14, 1
      %s163 = smul.addr %s162, 72
      %s164 = smul.addr %s163, 4
      %s165 = scalar_lea.vmem %s0, %s164
      %p166 = scmp.lt.s32.totalorder %s14, 1
      %s167 = scalar_select %p166, %s14, 1
      %s168 = smul.addr %s167, 18
      %s169 = smul.addr %s168, 4
      %s170 = scalar_lea.vmem %s3, %s169
      %v172 = vld [vmem:[%s165] sm:$0xf]
      %v173 = vld [vmem:[%s165 + $0x4] sm:$0xf]
      %v174 = vld [vmem:[%s165 + $0x8] sm:$0xf]
      %v175 = vld [vmem:[%s165 + $0xc] sm:$0xf]
      %v176 = vld [vmem:[%s165 + $0x10] sm:$0xf]
      %v177 = vld [vmem:[%s165 + $0x14] sm:$0xf]
      %v178 = vld [vmem:[%s165 + $0x18] sm:$0xf]
      %v179 = vld [vmem:[%s165 + $0x1c] sm:$0xf]
      %v180 = vld [vmem:[%s165 + $0x20] sm:$0xf]
      %v181 = vld [vmem:[%s165 + $0x24] sm:$0xf]
      %v182 = vld [vmem:[%s165 + $0x28] sm:$0xf]
      %v183 = vld [vmem:[%s165 + $0x2c] sm:$0xf]
      %v184 = vld [vmem:[%s165 + $0x30] sm:$0xf]
      %v185 = vld [vmem:[%s165 + $0x34] sm:$0xf]
      %v186 = vld [vmem:[%s165 + $0x38] sm:$0xf]
      %v187 = vld [vmem:[%s165 + $0x3c] sm:$0xf]
      %v188 = vld [vmem:[%s165 + $0x40] sm:$0xf]
      %v189 = vld [vmem:[%s165 + $0x44] sm:$0xf]
      %v190 = vld [vmem:[%s165 + $0x48] sm:$0xf]
      %v191 = vld [vmem:[%s165 + $0x4c] sm:$0xf]
      %v192 = vld [vmem:[%s165 + $0x50] sm:$0xf]
      %v193 = vld [vmem:[%s165 + $0x54] sm:$0xf]
      %v194 = vld [vmem:[%s165 + $0x58] sm:$0xf]
      %v195 = vld [vmem:[%s165 + $0x5c] sm:$0xf]
      %v196 = vld [vmem:[%s165 + $0x60] sm:$0xf]
      %v197 = vld [vmem:[%s165 + $0x64] sm:$0xf]
      %v198 = vld [vmem:[%s165 + $0x68] sm:$0xf]
      %v199 = vld [vmem:[%s165 + $0x6c] sm:$0xf]
      %v200 = vld [vmem:[%s165 + $0x70] sm:$0xf]
      %v201 = vld [vmem:[%s165 + $0x74] sm:$0xf]
      %v202 = vld [vmem:[%s165 + $0x78] sm:$0xf]
      %v203 = vld [vmem:[%s165 + $0x7c] sm:$0xf]
      %v204 = vld [vmem:[%s165 + $0x80] sm:$0xf]
      %v205 = vld [vmem:[%s165 + $0x84] sm:$0xf]
      %v206 = vld [vmem:[%s165 + $0x88] sm:$0xf]
      %v207 = vld [vmem:[%s165 + $0x8c] sm:$0xf]
      %v208 = vld [vmem:[%s165 + $0x90] sm:$0xf]
      %v209 = vld [vmem:[%s165 + $0x94] sm:$0xf]
      %v210 = vld [vmem:[%s165 + $0x98] sm:$0xf]
      %v211 = vld [vmem:[%s165 + $0x9c] sm:$0xf]
      %v212 = vld [vmem:[%s165 + $0xa0] sm:$0xf]
      %v213 = vld [vmem:[%s165 + $0xa4] sm:$0xf]
      %v214 = vld [vmem:[%s165 + $0xa8] sm:$0xf]
      %v215 = vld [vmem:[%s165 + $0xac] sm:$0xf]
      %v216 = vld [vmem:[%s165 + $0xb0] sm:$0xf]
      %v217 = vld [vmem:[%s165 + $0xb4] sm:$0xf]
      %v218 = vld [vmem:[%s165 + $0xb8] sm:$0xf]
      %v219 = vld [vmem:[%s165 + $0xbc] sm:$0xf]
      %v220 = vld [vmem:[%s165 + $0xc0] sm:$0xf]
      %v221 = vld [vmem:[%s165 + $0xc4] sm:$0xf]
      %v222 = vld [vmem:[%s165 + $0xc8] sm:$0xf]
      %v223 = vld [vmem:[%s165 + $0xcc] sm:$0xf]
      %v224 = vld [vmem:[%s165 + $0xd0] sm:$0xf]
      %v225 = vld [vmem:[%s165 + $0xd4] sm:$0xf]
      %v226 = vld [vmem:[%s165 + $0xd8] sm:$0xf]
      %v227 = vld [vmem:[%s165 + $0xdc] sm:$0xf]
      %v228 = vld [vmem:[%s165 + $0xe0] sm:$0xf]
      %v229 = vld [vmem:[%s165 + $0xe4] sm:$0xf]
      %v230 = vld [vmem:[%s165 + $0xe8] sm:$0xf]
      %v231 = vld [vmem:[%s165 + $0xec] sm:$0xf]
      %v232 = vld [vmem:[%s165 + $0xf0] sm:$0xf]
      %v233 = vld [vmem:[%s165 + $0xf4] sm:$0xf]
      %v234 = vld [vmem:[%s165 + $0xf8] sm:$0xf]
      %v235 = vld [vmem:[%s165 + $0xfc] sm:$0xf]
      %v236 = vld [vmem:[%s165 + $0x100] sm:$0xf]
      %v237 = vld [vmem:[%s165 + $0x104] sm:$0xf]
      %v238 = vld [vmem:[%s165 + $0x108] sm:$0xf]
      %v239 = vld [vmem:[%s165 + $0x10c] sm:$0xf]
      %v240 = vld [vmem:[%s165 + $0x110] sm:$0xf]
      %v241 = vld [vmem:[%s165 + $0x114] sm:$0xf]
      %v242 = vld [vmem:[%s165 + $0x118] sm:$0xf]
      %v243 = vld [vmem:[%s165 + $0x11c] sm:$0xf]
      %v244 = vld [vmem:[%s1] sm:$0xf]
      %v245 = vld [vmem:[%s1 + $0x4] sm:$0xf]
      %v246 = vld [vmem:[%s1 + $0x8] sm:$0xf]
      %v247 = vld [vmem:[%s1 + $0xc] sm:$0xf]
      %v248 = vld [vmem:[%s2] sm:$0x1]
      %v250 = vperm.slane %v248, 0
      %v324 = vunpack.c.l.b16 %v172
      %v325 = vunpack.c.l.b16 %v173
      %v326 = vunpack.c.l.b16 %v174
      %v327 = vunpack.c.l.b16 %v175
      %v328 = vunpack.c.l.b16 %v176
      %v329 = vunpack.c.l.b16 %v177
      %v330 = vunpack.c.l.b16 %v178
      %v331 = vunpack.c.l.b16 %v179
      %v332 = vunpack.c.l.b16 %v180
      %v333 = vunpack.c.l.b16 %v181
      %v334 = vunpack.c.l.b16 %v182
      %v335 = vunpack.c.l.b16 %v183
      %v336 = vunpack.c.l.b16 %v184
      %v337 = vunpack.c.l.b16 %v185
      %v338 = vunpack.c.l.b16 %v186
      %v339 = vunpack.c.l.b16 %v187
      %v340 = vunpack.c.l.b16 %v188
      %v341 = vunpack.c.l.b16 %v189
      %v342 = vunpack.c.l.b16 %v190
      %v343 = vunpack.c.l.b16 %v191
      %v344 = vunpack.c.l.b16 %v192
      %v345 = vunpack.c.l.b16 %v193
      %v346 = vunpack.c.l.b16 %v194
      %v347 = vunpack.c.l.b16 %v195
      %v348 = vunpack.c.l.b16 %v196
      %v349 = vunpack.c.l.b16 %v197
      %v350 = vunpack.c.l.b16 %v198
      %v351 = vunpack.c.l.b16 %v199
      %v352 = vunpack.c.l.b16 %v200
      %v353 = vunpack.c.l.b16 %v201
      %v354 = vunpack.c.l.b16 %v202
      %v355 = vunpack.c.l.b16 %v203
      %v356 = vunpack.c.l.b16 %v204
      %v357 = vunpack.c.l.b16 %v205
      %v358 = vunpack.c.l.b16 %v206
      %v359 = vunpack.c.l.b16 %v207
      %v360 = vunpack.c.l.b16 %v208
      %v361 = vunpack.c.l.b16 %v209
      %v362 = vunpack.c.l.b16 %v210
      %v363 = vunpack.c.l.b16 %v211
      %v364 = vunpack.c.l.b16 %v212
      %v365 = vunpack.c.l.b16 %v213
      %v366 = vunpack.c.l.b16 %v214
      %v367 = vunpack.c.l.b16 %v215
      %v368 = vunpack.c.l.b16 %v216
      %v369 = vunpack.c.l.b16 %v217
      %v370 = vunpack.c.l.b16 %v218
      %v371 = vunpack.c.l.b16 %v219
      %v372 = vunpack.c.l.b16 %v220
      %v373 = vunpack.c.l.b16 %v221
      %v374 = vunpack.c.l.b16 %v222
      %v375 = vunpack.c.l.b16 %v223
      %v376 = vunpack.c.l.b16 %v224
      %v377 = vunpack.c.l.b16 %v225
      %v378 = vunpack.c.l.b16 %v226
      %v379 = vunpack.c.l.b16 %v227
      %v380 = vunpack.c.l.b16 %v228
      %v381 = vunpack.c.l.b16 %v229
      %v382 = vunpack.c.l.b16 %v230
      %v383 = vunpack.c.l.b16 %v231
      %v384 = vunpack.c.l.b16 %v232
      %v385 = vunpack.c.l.b16 %v233
      %v386 = vunpack.c.l.b16 %v234
      %v387 = vunpack.c.l.b16 %v235
      %v388 = vunpack.c.l.b16 %v236
      %v389 = vunpack.c.l.b16 %v237
      %v390 = vunpack.c.l.b16 %v238
      %v391 = vunpack.c.l.b16 %v239
      %v392 = vunpack.c.l.b16 %v240
      %v393 = vunpack.c.l.b16 %v241
      %v394 = vunpack.c.l.b16 %v242
      %v395 = vunpack.c.l.b16 %v243
      %v396 = vpack.c.b16 %v325, %v324
      %v397 = vpack.c.b16 %v327, %v326
      %v398 = vpack.c.b16 %v329, %v328
      %v399 = vpack.c.b16 %v331, %v330
      %v400 = vpack.c.b16 %v333, %v332
      %v401 = vpack.c.b16 %v335, %v334
      %v402 = vpack.c.b16 %v337, %v336
      %v403 = vpack.c.b16 %v339, %v338
      %v404 = vpack.c.b16 %v341, %v340
      %v405 = vpack.c.b16 %v343, %v342
      %v406 = vpack.c.b16 %v345, %v344
      %v407 = vpack.c.b16 %v347, %v346
      %v408 = vpack.c.b16 %v349, %v348
      %v409 = vpack.c.b16 %v351, %v350
      %v410 = vpack.c.b16 %v353, %v352
      %v411 = vpack.c.b16 %v355, %v354
      %v412 = vpack.c.b16 %v357, %v356
      %v413 = vpack.c.b16 %v359, %v358
      %v414 = vpack.c.b16 %v361, %v360
      %v415 = vpack.c.b16 %v363, %v362
      %v416 = vpack.c.b16 %v365, %v364
      %v417 = vpack.c.b16 %v367, %v366
      %v418 = vpack.c.b16 %v369, %v368
      %v419 = vpack.c.b16 %v371, %v370
      %v420 = vpack.c.b16 %v373, %v372
      %v421 = vpack.c.b16 %v375, %v374
      %v422 = vpack.c.b16 %v377, %v376
      %v423 = vpack.c.b16 %v379, %v378
      %v424 = vpack.c.b16 %v381, %v380
      %v425 = vpack.c.b16 %v383, %v382
      %v426 = vpack.c.b16 %v385, %v384
      %v427 = vpack.c.b16 %v387, %v386
      %v428 = vpack.c.b16 %v389, %v388
      %v429 = vpack.c.b16 %v391, %v390
      %v430 = vpack.c.b16 %v393, %v392
      %v431 = vpack.c.b16 %v395, %v394
      %v436 = vunpack.c.l.b16 %v244
      %v437 = vunpack.c.l.b16 %v245
      %v438 = vunpack.c.l.b16 %v246
      %v439 = vunpack.c.l.b16 %v247
      %v440 = vpack.c.b16 %v437, %v436
      %v441 = vpack.c.b16 %v439, %v438
      %vm444 = vcmask 261120
      %v446 = vsel %vm444, %v396, 0
      %v449 = vsel %vm444, %v397, 0
      %v452 = vsel %vm444, %v398, 0
      %v455 = vsel %vm444, %v399, 0
      %v458 = vsel %vm444, %v400, 0
      %v461 = vsel %vm444, %v401, 0
      %v464 = vsel %vm444, %v402, 0
      %v467 = vsel %vm444, %v403, 0
      %v470 = vsel %vm444, %v404, 0
      %v473 = vsel %vm444, %v405, 0
      %v476 = vsel %vm444, %v406, 0
      %v479 = vsel %vm444, %v407, 0
      %v482 = vsel %vm444, %v408, 0
      %v485 = vsel %vm444, %v409, 0
      %v488 = vsel %vm444, %v410, 0
      %v491 = vsel %vm444, %v411, 0
      %v494 = vsel %vm444, %v412, 0
      %v497 = vsel %vm444, %v413, 0
      %v500 = vsel %vm444, %v414, 0
      %v503 = vsel %vm444, %v415, 0
      %v506 = vsel %vm444, %v416, 0
      %v509 = vsel %vm444, %v417, 0
      %v512 = vsel %vm444, %v418, 0
      %v515 = vsel %vm444, %v419, 0
      %v518 = vsel %vm444, %v420, 0
      %v521 = vsel %vm444, %v421, 0
      %v524 = vsel %vm444, %v422, 0
      %v527 = vsel %vm444, %v423, 0
      %v530 = vsel %vm444, %v424, 0
      %v533 = vsel %vm444, %v425, 0
      %v536 = vsel %vm444, %v426, 0
      %v539 = vsel %vm444, %v427, 0
      %v542 = vsel %vm444, %v428, 0
      %v545 = vsel %vm444, %v429, 0
      %v548 = vsel %vm444, %v430, 0
      %v551 = vsel %vm444, %v431, 0
      %553 = vmatpush.bf16.msra.mxu0 0
      %554 = vmatpush.bf16.msra.mxu0 0
      %555 = vmatpush.bf16.msra.mxu0 0
      %556 = vmatpush.bf16.msra.mxu0 0
      %557 = vmatpush.bf16.msra.mxu0 0
      %558 = vmatpush.bf16.msra.mxu0 0
      %559 = vmatpush.bf16.msra.mxu0 %v441
      %560 = vmatpush.bf16.msra.mxu0 %v440
      %561 = vmatmul.bf16.gmra.mxu0 %v446
      %v562 = vpop.f32.mrf.mxu0
      %v563 = vadd.f32 %v250, %v562
      %v564 = vpop.f32.mrf.mxu0
      %v565 = vadd.f32 %v250, %v564
      %566 = vmatmul.bf16.gmra.mxu0 %v449
      %v567 = vpop.f32.mrf.mxu0
      %v568 = vadd.f32 %v250, %v567
      %v569 = vpop.f32.mrf.mxu0
      %v570 = vadd.f32 %v250, %v569
      %571 = vmatmul.bf16.gmra.mxu0 %v452
      %v572 = vpop.f32.mrf.mxu0
      %v573 = vadd.f32 %v250, %v572
      %v574 = vpop.f32.mrf.mxu0
      %v575 = vadd.f32 %v250, %v574
      %576 = vmatmul.bf16.gmra.mxu0 %v455
      %v577 = vpop.f32.mrf.mxu0
      %v578 = vadd.f32 %v250, %v577
      %v579 = vpop.f32.mrf.mxu0
      %v580 = vadd.f32 %v250, %v579
      %581 = vmatmul.bf16.gmra.mxu0 %v458
      %v582 = vpop.f32.mrf.mxu0
      %v583 = vadd.f32 %v250, %v582
      %v584 = vpop.f32.mrf.mxu0
      %v585 = vadd.f32 %v250, %v584
      %586 = vmatmul.bf16.gmra.mxu0 %v461
      %v587 = vpop.f32.mrf.mxu0
      %v588 = vadd.f32 %v250, %v587
      %v589 = vpop.f32.mrf.mxu0
      %v590 = vadd.f32 %v250, %v589
      %591 = vmatmul.bf16.gmra.mxu0 %v464
      %v592 = vpop.f32.mrf.mxu0
      %v593 = vadd.f32 %v250, %v592
      %v594 = vpop.f32.mrf.mxu0
      %v595 = vadd.f32 %v250, %v594
      %596 = vmatmul.bf16.gmra.mxu0 %v467
      %v597 = vpop.f32.mrf.mxu0
      %v598 = vadd.f32 %v250, %v597
      %v599 = vpop.f32.mrf.mxu0
      %v600 = vadd.f32 %v250, %v599
      %601 = vmatmul.bf16.gmra.mxu0 %v470
      %v602 = vpop.f32.mrf.mxu0
      %v603 = vadd.f32 %v250, %v602
      %v604 = vpop.f32.mrf.mxu0
      %v605 = vadd.f32 %v250, %v604
      %606 = vmatmul.bf16.gmra.mxu0 %v473
      %v607 = vpop.f32.mrf.mxu0
      %v608 = vadd.f32 %v250, %v607
      %v609 = vpop.f32.mrf.mxu0
      %v610 = vadd.f32 %v250, %v609
      %611 = vmatmul.bf16.gmra.mxu0 %v476
      %v612 = vpop.f32.mrf.mxu0
      %v613 = vadd.f32 %v250, %v612
      %v614 = vpop.f32.mrf.mxu0
      %v615 = vadd.f32 %v250, %v614
      %616 = vmatmul.bf16.gmra.mxu0 %v479
      %v617 = vpop.f32.mrf.mxu0
      %v618 = vadd.f32 %v250, %v617
      %v619 = vpop.f32.mrf.mxu0
      %v620 = vadd.f32 %v250, %v619
      %621 = vmatmul.bf16.gmra.mxu0 %v482
      %v622 = vpop.f32.mrf.mxu0
      %v623 = vadd.f32 %v250, %v622
      %v624 = vpop.f32.mrf.mxu0
      %v625 = vadd.f32 %v250, %v624
      %626 = vmatmul.bf16.gmra.mxu0 %v485
      %v627 = vpop.f32.mrf.mxu0
      %v628 = vadd.f32 %v250, %v627
      %v629 = vpop.f32.mrf.mxu0
      %v630 = vadd.f32 %v250, %v629
      %631 = vmatmul.bf16.gmra.mxu0 %v488
      %v632 = vpop.f32.mrf.mxu0
      %v633 = vadd.f32 %v250, %v632
      %v634 = vpop.f32.mrf.mxu0
      %v635 = vadd.f32 %v250, %v634
      %636 = vmatmul.bf16.gmra.mxu0 %v491
      %v637 = vpop.f32.mrf.mxu0
      %v638 = vadd.f32 %v250, %v637
      %v639 = vpop.f32.mrf.mxu0
      %v640 = vadd.f32 %v250, %v639
      %641 = vmatmul.bf16.gmra.mxu0 %v494
      %v642 = vpop.f32.mrf.mxu0
      %v643 = vadd.f32 %v250, %v642
      %v644 = vpop.f32.mrf.mxu0
      %v645 = vadd.f32 %v250, %v644
      %646 = vmatmul.bf16.gmra.mxu0 %v497
      %v647 = vpop.f32.mrf.mxu0
      %v648 = vadd.f32 %v250, %v647
      %v649 = vpop.f32.mrf.mxu0
      %v650 = vadd.f32 %v250, %v649
      %651 = vmatmul.bf16.gmra.mxu0 %v500
      %v652 = vpop.f32.mrf.mxu0
      %v653 = vadd.f32 %v250, %v652
      %v654 = vpop.f32.mrf.mxu0
      %v655 = vadd.f32 %v250, %v654
      %656 = vmatmul.bf16.gmra.mxu0 %v503
      %v657 = vpop.f32.mrf.mxu0
      %v658 = vadd.f32 %v250, %v657
      %v659 = vpop.f32.mrf.mxu0
      %v660 = vadd.f32 %v250, %v659
      %661 = vmatmul.bf16.gmra.mxu0 %v506
      %v662 = vpop.f32.mrf.mxu0
      %v663 = vadd.f32 %v250, %v662
      %v664 = vpop.f32.mrf.mxu0
      %v665 = vadd.f32 %v250, %v664
      %666 = vmatmul.bf16.gmra.mxu0 %v509
      %v667 = vpop.f32.mrf.mxu0
      %v668 = vadd.f32 %v250, %v667
      %v669 = vpop.f32.mrf.mxu0
      %v670 = vadd.f32 %v250, %v669
      %671 = vmatmul.bf16.gmra.mxu0 %v512
      %v672 = vpop.f32.mrf.mxu0
      %v673 = vadd.f32 %v250, %v672
      %v674 = vpop.f32.mrf.mxu0
      %v675 = vadd.f32 %v250, %v674
      %676 = vmatmul.bf16.gmra.mxu0 %v515
      %v677 = vpop.f32.mrf.mxu0
      %v678 = vadd.f32 %v250, %v677
      %v679 = vpop.f32.mrf.mxu0
      %v680 = vadd.f32 %v250, %v679
      %681 = vmatmul.bf16.gmra.mxu0 %v518
      %v682 = vpop.f32.mrf.mxu0
      %v683 = vadd.f32 %v250, %v682
      %v684 = vpop.f32.mrf.mxu0
      %v685 = vadd.f32 %v250, %v684
      %686 = vmatmul.bf16.gmra.mxu0 %v521
      %v687 = vpop.f32.mrf.mxu0
      %v688 = vadd.f32 %v250, %v687
      %v689 = vpop.f32.mrf.mxu0
      %v690 = vadd.f32 %v250, %v689
      %691 = vmatmul.bf16.gmra.mxu0 %v524
      %v692 = vpop.f32.mrf.mxu0
      %v693 = vadd.f32 %v250, %v692
      %v694 = vpop.f32.mrf.mxu0
      %v695 = vadd.f32 %v250, %v694
      %696 = vmatmul.bf16.gmra.mxu0 %v527
      %v697 = vpop.f32.mrf.mxu0
      %v698 = vadd.f32 %v250, %v697
      %v699 = vpop.f32.mrf.mxu0
      %v700 = vadd.f32 %v250, %v699
      %701 = vmatmul.bf16.gmra.mxu0 %v530
      %v702 = vpop.f32.mrf.mxu0
      %v703 = vadd.f32 %v250, %v702
      %v704 = vpop.f32.mrf.mxu0
      %v705 = vadd.f32 %v250, %v704
      %706 = vmatmul.bf16.gmra.mxu0 %v533
      %v707 = vpop.f32.mrf.mxu0
      %v708 = vadd.f32 %v250, %v707
      %v709 = vpop.f32.mrf.mxu0
      %v710 = vadd.f32 %v250, %v709
      %711 = vmatmul.bf16.gmra.mxu0 %v536
      %v712 = vpop.f32.mrf.mxu0
      %v713 = vadd.f32 %v250, %v712
      %v714 = vpop.f32.mrf.mxu0
      %v715 = vadd.f32 %v250, %v714
      %716 = vmatmul.bf16.gmra.mxu0 %v539
      %v717 = vpop.f32.mrf.mxu0
      %v718 = vadd.f32 %v250, %v717
      %v719 = vpop.f32.mrf.mxu0
      %v720 = vadd.f32 %v250, %v719
      %721 = vmatmul.bf16.gmra.mxu0 %v542
      %v722 = vpop.f32.mrf.mxu0
      %v723 = vadd.f32 %v250, %v722
      %v724 = vpop.f32.mrf.mxu0
      %v725 = vadd.f32 %v250, %v724
      %726 = vmatmul.bf16.gmra.mxu0 %v545
      %v727 = vpop.f32.mrf.mxu0
      %v728 = vadd.f32 %v250, %v727
      %v729 = vpop.f32.mrf.mxu0
      %v730 = vadd.f32 %v250, %v729
      %731 = vmatmul.bf16.gmra.mxu0 %v548
      %v732 = vpop.f32.mrf.mxu0
      %v733 = vadd.f32 %v250, %v732
      %v734 = vpop.f32.mrf.mxu0
      %v735 = vadd.f32 %v250, %v734
      %736 = vmatmul.bf16.gmra.mxu0 %v551
      %v737 = vpop.f32.mrf.mxu0
      %v738 = vadd.f32 %v250, %v737
      %v739 = vpop.f32.mrf.mxu0
      %v740 = vadd.f32 %v250, %v739
      %741 = vdwg.mxu0
      %v742 = vmax.f32 %v563, 0.0
      %v743 = vmax.f32 %v565, 0.0
      %v744 = vmax.f32 %v568, 0.0
      %v745 = vmax.f32 %v570, 0.0
      %v746 = vmax.f32 %v573, 0.0
      %v747 = vmax.f32 %v575, 0.0
      %v748 = vmax.f32 %v578, 0.0
      %v749 = vmax.f32 %v580, 0.0
      %v750 = vmax.f32 %v583, 0.0
      %v751 = vmax.f32 %v585, 0.0
      %v752 = vmax.f32 %v588, 0.0
      %v753 = vmax.f32 %v590, 0.0
      %v754 = vmax.f32 %v593, 0.0
      %v755 = vmax.f32 %v595, 0.0
      %v756 = vmax.f32 %v598, 0.0
      %v757 = vmax.f32 %v600, 0.0
      %v758 = vmax.f32 %v603, 0.0
      %v759 = vmax.f32 %v605, 0.0
      %v760 = vmax.f32 %v608, 0.0
      %v761 = vmax.f32 %v610, 0.0
      %v762 = vmax.f32 %v613, 0.0
      %v763 = vmax.f32 %v615, 0.0
      %v764 = vmax.f32 %v618, 0.0
      %v765 = vmax.f32 %v620, 0.0
      %v766 = vmax.f32 %v623, 0.0
      %v767 = vmax.f32 %v625, 0.0
      %v768 = vmax.f32 %v628, 0.0
      %v769 = vmax.f32 %v630, 0.0
      %v770 = vmax.f32 %v633, 0.0
      %v771 = vmax.f32 %v635, 0.0
      %v772 = vmax.f32 %v638, 0.0
      %v773 = vmax.f32 %v640, 0.0
      %v774 = vmax.f32 %v643, 0.0
      %v775 = vmax.f32 %v645, 0.0
      %v776 = vmax.f32 %v648, 0.0
      %v777 = vmax.f32 %v650, 0.0
      %v778 = vmax.f32 %v653, 0.0
      %v779 = vmax.f32 %v655, 0.0
      %v780 = vmax.f32 %v658, 0.0
      %v781 = vmax.f32 %v660, 0.0
      %v782 = vmax.f32 %v663, 0.0
      %v783 = vmax.f32 %v665, 0.0
      %v784 = vmax.f32 %v668, 0.0
      %v785 = vmax.f32 %v670, 0.0
      %v786 = vmax.f32 %v673, 0.0
      %v787 = vmax.f32 %v675, 0.0
      %v788 = vmax.f32 %v678, 0.0
      %v789 = vmax.f32 %v680, 0.0
      %v790 = vmax.f32 %v683, 0.0
      %v791 = vmax.f32 %v685, 0.0
      %v792 = vmax.f32 %v688, 0.0
      %v793 = vmax.f32 %v690, 0.0
      %v794 = vmax.f32 %v693, 0.0
      %v795 = vmax.f32 %v695, 0.0
      %v796 = vmax.f32 %v698, 0.0
      %v797 = vmax.f32 %v700, 0.0
      %v798 = vmax.f32 %v703, 0.0
      %v799 = vmax.f32 %v705, 0.0
      %v800 = vmax.f32 %v708, 0.0
      %v801 = vmax.f32 %v710, 0.0
      %v802 = vmax.f32 %v713, 0.0
      %v803 = vmax.f32 %v715, 0.0
      %v804 = vmax.f32 %v718, 0.0
      %v805 = vmax.f32 %v720, 0.0
      %v806 = vmax.f32 %v723, 0.0
      %v807 = vmax.f32 %v725, 0.0
      %v808 = vmax.f32 %v728, 0.0
      %v809 = vmax.f32 %v730, 0.0
      %v810 = vmax.f32 %v733, 0.0
      %v811 = vmax.f32 %v735, 0.0
      %v812 = vmax.f32 %v738, 0.0
      %v813 = vmax.f32 %v740, 0.0
      %v814 = vmax.f32 %v742, %v760
      %v815 = vmax.f32 %v743, %v761
      %v816 = vmax.f32 %v744, %v762
      %v817 = vmax.f32 %v745, %v763
      %v818 = vmax.f32 %v746, %v764
      %v819 = vmax.f32 %v747, %v765
      %v820 = vmax.f32 %v748, %v766
      %v821 = vmax.f32 %v749, %v767
      %v822 = vmax.f32 %v750, %v768
      %v823 = vmax.f32 %v751, %v769
      %v824 = vmax.f32 %v752, %v770
      %v825 = vmax.f32 %v753, %v771
      %v826 = vmax.f32 %v754, %v772
      %v827 = vmax.f32 %v755, %v773
      %v828 = vmax.f32 %v756, %v774
      %v829 = vmax.f32 %v757, %v775
      %v830 = vmax.f32 %v758, %v776
      %v831 = vmax.f32 %v759, %v777
      %v832 = vmax.f32 %v778, %v796
      %v833 = vmax.f32 %v779, %v797
      %v834 = vmax.f32 %v780, %v798
      %v835 = vmax.f32 %v781, %v799
      %v836 = vmax.f32 %v782, %v800
      %v837 = vmax.f32 %v783, %v801
      %v838 = vmax.f32 %v784, %v802
      %v839 = vmax.f32 %v785, %v803
      %v840 = vmax.f32 %v786, %v804
      %v841 = vmax.f32 %v787, %v805
      %v842 = vmax.f32 %v788, %v806
      %v843 = vmax.f32 %v789, %v807
      %v844 = vmax.f32 %v790, %v808
      %v845 = vmax.f32 %v791, %v809
      %v846 = vmax.f32 %v792, %v810
      %v847 = vmax.f32 %v793, %v811
      %v848 = vmax.f32 %v794, %v812
      %v849 = vmax.f32 %v795, %v813
      %v850 = vmax.f32 %v814, %v832
      %v851 = vmax.f32 %v815, %v833
      %v852 = vmax.f32 %v816, %v834
      %v853 = vmax.f32 %v817, %v835
      %v854 = vmax.f32 %v818, %v836
      %v855 = vmax.f32 %v819, %v837
      %v856 = vmax.f32 %v820, %v838
      %v857 = vmax.f32 %v821, %v839
      %v858 = vmax.f32 %v822, %v840
      %v859 = vmax.f32 %v823, %v841
      %v860 = vmax.f32 %v824, %v842
      %v861 = vmax.f32 %v825, %v843
      %v862 = vmax.f32 %v826, %v844
      %v863 = vmax.f32 %v827, %v845
      %v864 = vmax.f32 %v828, %v846
      %v865 = vmax.f32 %v829, %v847
      %v866 = vmax.f32 %v830, %v848
      %v867 = vmax.f32 %v831, %v849
      %v868 = vpack.c.bf16 %v850, %v850
      %v869 = vpack.c.bf16 %v851, %v851
      %v870 = vpack.c.bf16 %v852, %v852
      %v871 = vpack.c.bf16 %v853, %v853
      %v872 = vpack.c.bf16 %v854, %v854
      %v873 = vpack.c.bf16 %v855, %v855
      %v874 = vpack.c.bf16 %v856, %v856
      %v875 = vpack.c.bf16 %v857, %v857
      %v876 = vpack.c.bf16 %v858, %v858
      %v877 = vpack.c.bf16 %v859, %v859
      %v878 = vpack.c.bf16 %v860, %v860
      %v879 = vpack.c.bf16 %v861, %v861
      %v880 = vpack.c.bf16 %v862, %v862
      %v881 = vpack.c.bf16 %v863, %v863
      %v882 = vpack.c.bf16 %v864, %v864
      %v883 = vpack.c.bf16 %v865, %v865
      %v884 = vpack.c.bf16 %v866, %v866
      %v885 = vpack.c.bf16 %v867, %v867
      %886 = vst [vmem:[%s170] sm:$0xf] %v868
      %887 = vst [vmem:[%s170 + $0x4] sm:$0xf] %v869
      %888 = vst [vmem:[%s170 + $0x8] sm:$0xf] %v870
      %889 = vst [vmem:[%s170 + $0xc] sm:$0xf] %v871
      %890 = vst [vmem:[%s170 + $0x10] sm:$0xf] %v872
      %891 = vst [vmem:[%s170 + $0x14] sm:$0xf] %v873
      %892 = vst [vmem:[%s170 + $0x18] sm:$0xf] %v874
      %893 = vst [vmem:[%s170 + $0x1c] sm:$0xf] %v875
      %894 = vst [vmem:[%s170 + $0x20] sm:$0xf] %v876
      %895 = vst [vmem:[%s170 + $0x24] sm:$0xf] %v877
      %896 = vst [vmem:[%s170 + $0x28] sm:$0xf] %v878
      %897 = vst [vmem:[%s170 + $0x2c] sm:$0xf] %v879
      %898 = vst [vmem:[%s170 + $0x30] sm:$0xf] %v880
      %899 = vst [vmem:[%s170 + $0x34] sm:$0xf] %v881
      %900 = vst [vmem:[%s170 + $0x38] sm:$0xf] %v882
      %901 = vst [vmem:[%s170 + $0x3c] sm:$0xf] %v883
      %902 = vst [vmem:[%s170 + $0x40] sm:$0xf] %v884
      %903 = vst [vmem:[%s170 + $0x44] sm:$0xf] %v885
      %p904 = scmp.lt.s32.totalorder %s14, 1
      %s905 = scalar_select %p904, %s14, 1
      %s906 = smul.addr %s905, 18
      %s907 = smul.addr %s906, 4
      %s908 = scalar_lea.vmem %s3, %s907
      // Predicated region
      $region33: #{convnet_forward.3} parent=31 // pred_check
        %p909 = pneg %p100
      $region34: #{convnet_forward.3} parent=31 // pred_check_branch
        %911 = sbr.rel (%p909) target = $region36
      $region35: #{convnet_forward.3} parent=31 // pred_region
        _
      $region36: #{convnet_forward.3} parent=31 // pred_fallthru
        _
    $region32: #{convnet_forward.3} parent=5 // pred_fallthru
      _
    %p912 = scmp.le.s32.totalorder 2, %s9
    // Predicated region
    $region37: #{convnet_forward.3} parent=5 // pred_check
      %p913 = pneg %p912
    $region38: #{convnet_forward.3} parent=5 // pred_check_branch
      %915 = sbr.rel (%p913) target = $region40
    $region39: #{convnet_forward.3} parent=5 // pred_region
      %s916 = ssub.s32 %s9, 2
      // Predicated region
      $region41: #{convnet_forward.3} parent=39 // pred_check
        %p917 = pneg %p106
      $region42: #{convnet_forward.3} parent=39 // pred_check_branch
        %919 = sbr.rel (%p917) target = $region44
      $region43: #{convnet_forward.3} parent=39 // pred_region
        %p920 = scmp.lt.s32.totalorder %s15, 1
        %s921 = scalar_select %p920, %s15, 1
        %s922 = smul.addr %s921, 18
        %s923 = smul.addr %s922, 4
        %s924 = scalar_lea.vmem %s3, %s923
      $region44: #{convnet_forward.3} parent=39 // pred_fallthru
        _
    $region40: #{convnet_forward.3} parent=5 // pred_fallthru
      _
  $region6: #{convnet_forward.3} parent=0 // loop_footer
    %s13 = sadd.s32 1, %s9
  $region7: #{convnet_forward.3} parent=0 // loop_footer_branch
    %8 = sbr.rel target = $region3
  $region8: #{convnet_forward.3} parent=0 // loop_exit
    _

// kernel: convnet_forward.4
$region0: #{convnet_forward.4}
  #allocation0 [shape = 'u32[]', space=smem, size = 0x4, offset = 0x4, fixed_abs, tag = 'smem constant byte address 0x4 - core index']
  #allocation1 [shape = 'u32[72,128]{1,0:T(1,128)}', space=vmem, size = 0x9000, scoped, tag = 'internal scratch']
  %s0 = inlined_call_operand.vmem [shape: bf16[2,64,200], index: 0, kind: input, shape index: {}]
  %s1 = inlined_call_operand.vmem [shape: bf16[200,128], index: 1, kind: input, shape index: {}]
  %s2 = inlined_call_operand.vmem [shape: f32[1,128], index: 2, kind: input, shape index: {}]
  %s3 = inlined_call_operand.vmem [shape: bf16[2,16,128], index: 3, kind: output, shape index: {}]
  %s4 = sld [smem:[#allocation0]]
  $region45: #{convnet_forward.4} parent=0
    _
  %s6 = ssub.s32 1, %s4
  %s7 = scalar_select 0, %s6, %s4
  loop: start=0, step=1, limit=4
  $region2: #{convnet_forward.4} parent=0 // loop_pre_header
    _
  $region3: #{convnet_forward.4} parent=0 // loop_header
    %s9 = sphi 0, %s13
    %p10 = scmp.ge.s32.totalorder %s9, 4
    %s19 = sphi 0, %s21
    %s22 = sphi 0, %s19
    %s23 = sphi 0, %s22
    %s39 = sphi 0, %s23
    %s43 = sphi 0, %s43
    %s45 = sphi 0, %s43
    %s46 = sphi 0, %s45
    %s60 = sphi 0, %s46
    %s64 = sphi 0, %s64
    %s66 = sphi 0, %s64
    %s67 = sphi 0, %s66
    %s81 = sphi 0, %s67
    %s87 = sphi 0, %s89
    %s90 = sphi 0, %s87
    %s91 = sphi 0, %s90
    %s107 = sphi 0, %s91
  $region4: #{convnet_forward.4} parent=0 // loop_header_branch
    %12 = sbr.rel (%p10) target = $region8
  $region5: #{convnet_forward.4} parent=0 // loop_body
    %s14 = ssub.s32 %s9, 1
    %s15 = ssub.s32 %s9, 2
    %s16 = sadd.s32 %s9, 1
    %s17 = ssub.s32 %s9, %s16
    %p18 = scmp.eq.s32.totalorder %s17, 0
    %s20 = sadd.s32 %s19, 1
    %s21 = scalar_select %p18, %s19, %s20
    %p24 = pneg %p18
    %p25 = scmp.eq.s32.totalorder %s9, 1
    %p26 = por %p24, %p25
    %p27 = scmp.ne.s32.totalorder %s19, %s22
    %p28 = scmp.eq.s32.totalorder %s9, 0
    %p29 = por %p27, %p28
    %p30 = scmp.ne.s32.totalorder %s19, %s22
    %p31 = scmp.eq.s32.totalorder %s14, 1
    %p32 = por %p30, %p31
    %p33 = scmp.ne.s32.totalorder %s22, %s23
    %p34 = scmp.eq.s32.totalorder %s14, 0
    %p35 = por %p33, %p34
    %p36 = scmp.ne.s32.totalorder %s22, %s23
    %p37 = scmp.eq.s32.totalorder %s15, 1
    %p38 = por %p36, %p37
    %p40 = scmp.ne.s32.totalorder %s23, %s39
    %p41 = scmp.eq.s32.totalorder %s15, 0
    %p42 = por %p40, %p41
    %s44 = sadd.s32 %s43, 1
    %p47 = scmp.eq.s32.totalorder %s9, 1
    %p48 = scmp.ne.s32.totalorder %s43, %s45
    %p49 = scmp.eq.s32.totalorder %s9, 0
    %p50 = por %p48, %p49
    %p51 = scmp.ne.s32.totalorder %s43, %s45
    %p52 = scmp.eq.s32.totalorder %s14, 1
    %p53 = por %p51, %p52
    %p54 = scmp.ne.s32.totalorder %s45, %s46
    %p55 = scmp.eq.s32.totalorder %s14, 0
    %p56 = por %p54, %p55
    %p57 = scmp.ne.s32.totalorder %s45, %s46
    %p58 = scmp.eq.s32.totalorder %s15, 1
    %p59 = por %p57, %p58
    %p61 = scmp.ne.s32.totalorder %s46, %s60
    %p62 = scmp.eq.s32.totalorder %s15, 0
    %p63 = por %p61, %p62
    %s65 = sadd.s32 %s64, 1
    %p68 = scmp.eq.s32.totalorder %s9, 1
    %p69 = scmp.ne.s32.totalorder %s64, %s66
    %p70 = scmp.eq.s32.totalorder %s9, 0
    %p71 = por %p69, %p70
    %p72 = scmp.ne.s32.totalorder %s64, %s66
    %p73 = scmp.eq.s32.totalorder %s14, 1
    %p74 = por %p72, %p73
    %p75 = scmp.ne.s32.totalorder %s66, %s67
    %p76 = scmp.eq.s32.totalorder %s14, 0
    %p77 = por %p75, %p76
    %p78 = scmp.ne.s32.totalorder %s66, %s67
    %p79 = scmp.eq.s32.totalorder %s15, 1
    %p80 = por %p78, %p79
    %p82 = scmp.ne.s32.totalorder %s67, %s81
    %p83 = scmp.eq.s32.totalorder %s15, 0
    %p84 = por %p82, %p83
    %s85 = ssub.s32 %s9, %s16
    %p86 = scmp.eq.s32.totalorder %s85, 0
    %s88 = sadd.s32 %s87, 1
    %s89 = scalar_select %p86, %s87, %s88
    %p92 = pneg %p86
    %p93 = scmp.eq.s32.totalorder %s9, 1
    %p94 = por %p92, %p93
    %p95 = scmp.ne.s32.totalorder %s87, %s90
    %p96 = scmp.eq.s32.totalorder %s9, 0
    %p97 = por %p95, %p96
    %p98 = scmp.ne.s32.totalorder %s87, %s90
    %p99 = scmp.eq.s32.totalorder %s14, 1
    %p100 = por %p98, %p99
    %p101 = scmp.ne.s32.totalorder %s90, %s91
    %p102 = scmp.eq.s32.totalorder %s14, 0
    %p103 = por %p101, %p102
    %p104 = scmp.ne.s32.totalorder %s90, %s91
    %p105 = scmp.eq.s32.totalorder %s15, 1
    %p106 = por %p104, %p105
    %p108 = scmp.ne.s32.totalorder %s91, %s107
    %p109 = scmp.eq.s32.totalorder %s15, 0
    %p110 = por %p108, %p109
    %p111 = scmp.le.s32.totalorder 1, %s9
    %p112 = scmp.lt.s32.totalorder %s9, 3
    %p113 = pnand %p111, %p112
    %p114 = pneg %p113
    // Predicated region
    $region9: #{convnet_forward.4} parent=5 // pred_check
      _
    $region10: #{convnet_forward.4} parent=5 // pred_check_branch
      %116 = sbr.rel (%p113) target = $region12
    $region11: #{convnet_forward.4} parent=5 // pred_region
      %s117 = ssub.s32 %s9, 1
      // Predicated region
      $region13: #{convnet_forward.4} parent=11 // pred_check
        %p118 = pneg %p56
      $region14: #{convnet_forward.4} parent=11 // pred_check_branch
        %120 = sbr.rel (%p118) target = $region16
      $region15: #{convnet_forward.4} parent=11 // pred_region
        _
      $region16: #{convnet_forward.4} parent=11 // pred_fallthru
        _
      // Predicated region
      $region17: #{convnet_forward.4} parent=11 // pred_check
        %p121 = pneg %p77
      $region18: #{convnet_forward.4} parent=11 // pred_check_branch
        %123 = sbr.rel (%p121) target = $region20
      $region19: #{convnet_forward.4} parent=11 // pred_region
        _
      $region20: #{convnet_forward.4} parent=11 // pred_fallthru
        _
    $region12: #{convnet_forward.4} parent=5 // pred_fallthru
      _
    %p124 = scmp.lt.s32.totalorder %s9, 2
    // Predicated region
    $region21: #{convnet_forward.4} parent=5 // pred_check
      %p125 = pneg %p124
    $region22: #{convnet_forward.4} parent=5 // pred_check_branch
      %127 = sbr.rel (%p125) target = $region24
    $region23: #{convnet_forward.4} parent=5 // pred_region
      // Predicated region
      $region25: #{convnet_forward.4} parent=23 // pred_check
        %p128 = pneg %p29
      $region26: #{convnet_forward.4} parent=23 // pred_check_branch
        %130 = sbr.rel (%p128) target = $region28
      $region27: #{convnet_forward.4} parent=23 // pred_region
        %p131 = scmp.lt.s32.totalorder %s9, 1
        %s132 = scalar_select %p131, %s9, 1
        %s133 = smul.addr %s132, 16
        %s134 = smul.addr %s133, 4
        %s135 = scalar_lea.vmem %s0, %s134
      $region28: #{convnet_forward.4} parent=23 // pred_fallthru
        _
    $region24: #{convnet_forward.4} parent=5 // pred_fallthru
      _
    %p136 = scmp.le.s32.totalorder 1, %s9
    %p137 = scmp.lt.s32.totalorder %s9, 3
    %p138 = pnand %p136, %p137
    %p139 = pneg %p138
    // Predicated region
    $region29: #{convnet_forward.4} parent=5 // pred_check
      _
    $region30: #{convnet_forward.4} parent=5 // pred_check_branch
      %141 = sbr.rel (%p138) target = $region32
    $region31: #{convnet_forward.4} parent=5 // pred_region
      %s142 = ssub.s32 %s9, 1
      %p143 = scmp.lt.s32.totalorder %s14, 1
      %s144 = scalar_select %p143, %s14, 1
      %s145 = smul.addr %s144, 16
      %s146 = smul.addr %s145, 4
      %s147 = scalar_lea.vmem %s0, %s146
      %p148 = pneg %p35
      %p149 = pneg %p32
      %p150 = pneg %p56
      %p151 = pneg %p53
      %p152 = pneg %p77
      %p153 = pneg %p74
      %p154 = pneg %p103
      %p155 = pneg %p100
      %p156 = scmp.lt.s32.totalorder %s14, 1
      %s157 = scalar_select %p156, %s14, 1
      %s158 = smul.addr %s157, 2
      %s159 = smul.addr %s158, 4
      %s160 = scalar_lea.vmem %s3, %s159
      %p161 = scmp.lt.s32.totalorder %s14, 1
      %s162 = scalar_select %p161, %s14, 1
      %s163 = smul.addr %s162, 16
      %s164 = smul.addr %s163, 4
      %s165 = scalar_lea.vmem %s0, %s164
      %p166 = scmp.lt.s32.totalorder %s14, 1
      %s167 = scalar_select %p166, %s14, 1
      %s168 = smul.addr %s167, 2
      %s169 = smul.addr %s168, 4
      %s170 = scalar_lea.vmem %s3, %s169
      %v172 = vld [vmem:[%s165] sm:$0xff]
      %v173 = vld [vmem:[%s165 + $0x8] sm:$0xff]
      %v174 = vld [vmem:[%s165 + $0x10] sm:$0xff]
      %v175 = vld [vmem:[%s165 + $0x18] sm:$0xff]
      %v176 = vld [vmem:[%s165 + $0x20] sm:$0xff]
      %v177 = vld [vmem:[%s165 + $0x28] sm:$0xff]
      %v178 = vld [vmem:[%s165 + $0x30] sm:$0xff]
      %v179 = vld [vmem:[%s165 + $0x38] sm:$0xff]
      %v180 = vld [vmem:[%s1] sm:$0xf]
      %v181 = vld [vmem:[%s1 + $0x4] sm:$0xf]
      %v182 = vld [vmem:[%s1 + $0x8] sm:$0xf]
      %v183 = vld [vmem:[%s1 + $0xc] sm:$0xf]
      %v184 = vld [vmem:[%s1 + $0x10] sm:$0xf]
      %v185 = vld [vmem:[%s1 + $0x14] sm:$0xf]
      %v186 = vld [vmem:[%s1 + $0x18] sm:$0xf]
      %v187 = vld [vmem:[%s1 + $0x1c] sm:$0xf]
      %v188 = vld [vmem:[%s1 + $0x20] sm:$0xf]
      %v189 = vld [vmem:[%s1 + $0x24] sm:$0xf]
      %v190 = vld [vmem:[%s1 + $0x28] sm:$0xf]
      %v191 = vld [vmem:[%s1 + $0x2c] sm:$0xf]
      %v192 = vld [vmem:[%s1 + $0x30] sm:$0xf]
      %v193 = vld [vmem:[%s1 + $0x34] sm:$0xf]
      %v194 = vld [vmem:[%s1 + $0x38] sm:$0xf]
      %v195 = vld [vmem:[%s1 + $0x3c] sm:$0xf]
      %v196 = vld [vmem:[%s1 + $0x40] sm:$0xf]
      %v197 = vld [vmem:[%s1 + $0x44] sm:$0xf]
      %v198 = vld [vmem:[%s1 + $0x48] sm:$0xf]
      %v199 = vld [vmem:[%s1 + $0x4c] sm:$0xf]
      %v200 = vld [vmem:[%s1 + $0x50] sm:$0xf]
      %v201 = vld [vmem:[%s1 + $0x54] sm:$0xf]
      %v202 = vld [vmem:[%s1 + $0x58] sm:$0xf]
      %v203 = vld [vmem:[%s1 + $0x5c] sm:$0xf]
      %v204 = vld [vmem:[%s1 + $0x60] sm:$0xf]
      %v205 = vld [vmem:[%s2] sm:$0x1]
      %v207 = vperm.slane %v205, 0
      %v217 = vunpack.c.l.b16 %v172
      %v218 = vunpack.c.h.b16 %v172
      %v219 = vunpack.c.l.b16 %v173
      %v220 = vunpack.c.h.b16 %v173
      %v221 = vunpack.c.l.b16 %v174
      %v222 = vunpack.c.h.b16 %v174
      %v223 = vunpack.c.l.b16 %v175
      %v224 = vunpack.c.h.b16 %v175
      %v225 = vunpack.c.l.b16 %v176
      %v226 = vunpack.c.h.b16 %v176
      %v227 = vunpack.c.l.b16 %v177
      %v228 = vunpack.c.h.b16 %v177
      %v229 = vunpack.c.l.b16 %v178
      %v230 = vunpack.c.h.b16 %v178
      %v231 = vunpack.c.l.b16 %v179
      %v232 = vunpack.c.h.b16 %v179
      %v233 = vpack.c.b16 %v219, %v217
      %v234 = vpack.c.b16 %v220, %v218
      %v235 = vpack.c.b16 %v223, %v221
      %v236 = vpack.c.b16 %v224, %v222
      %v237 = vpack.c.b16 %v227, %v225
      %v238 = vpack.c.b16 %v228, %v226
      %v239 = vpack.c.b16 %v231, %v229
      %v240 = vpack.c.b16 %v232, %v230
      %v270 = vunpack.c.l.b16 %v180
      %v271 = vunpack.c.l.b16 %v181
      %v272 = vunpack.c.l.b16 %v182
      %v273 = vunpack.c.l.b16 %v183
      %v274 = vunpack.c.l.b16 %v184
      %v275 = vunpack.c.l.b16 %v185
      %v276 = vunpack.c.l.b16 %v186
      %v277 = vunpack.c.l.b16 %v187
      %v278 = vunpack.c.l.b16 %v188
      %v279 = vunpack.c.l.b16 %v189
      %v280 = vunpack.c.l.b16 %v190
      %v281 = vunpack.c.l.b16 %v191
      %v282 = vunpack.c.l.b16 %v192
      %v283 = vunpack.c.l.b16 %v193
      %v284 = vunpack.c.l.b16 %v194
      %v285 = vunpack.c.l.b16 %v195
      %v286 = vunpack.c.l.b16 %v196
      %v287 = vunpack.c.l.b16 %v197
      %v288 = vunpack.c.l.b16 %v198
      %v289 = vunpack.c.l.b16 %v199
      %v290 = vunpack.c.l.b16 %v200
      %v291 = vunpack.c.l.b16 %v201
      %v292 = vunpack.c.l.b16 %v202
      %v293 = vunpack.c.l.b16 %v203
      %v294 = vunpack.c.l.b16 %v204
      %v295 = vpack.c.b16 %v271, %v270
      %v296 = vpack.c.b16 %v273, %v272
      %v297 = vpack.c.b16 %v275, %v274
      %v298 = vpack.c.b16 %v277, %v276
      %v299 = vpack.c.b16 %v279, %v278
      %v300 = vpack.c.b16 %v281, %v280
      %v301 = vpack.c.b16 %v283, %v282
      %v302 = vpack.c.b16 %v285, %v284
      %v303 = vpack.c.b16 %v287, %v286
      %v304 = vpack.c.b16 %v289, %v288
      %v305 = vpack.c.b16 %v291, %v290
      %v306 = vpack.c.b16 %v293, %v292
      %v307 = vpack.c.b16 %v294, %v294
      %vm320 = vcmask 588800
      %v322 = vsel %vm320, %v234, 0
      %v325 = vsel %vm320, %v236, 0
      %v328 = vsel %vm320, %v238, 0
      %v331 = vsel %vm320, %v240, 0
      %vm333 = vcmask 1043456
      %v335 = vsel %vm333, %v307, 0
      %337 = vmatpush.bf16.msra.mxu0 %v302
      %338 = vmatpush.bf16.msra.mxu0 %v301
      %339 = vmatpush.bf16.msra.mxu0 %v300
      %340 = vmatpush.bf16.msra.mxu0 %v299
      %341 = vmatpush.bf16.msra.mxu0 %v298
      %342 = vmatpush.bf16.msra.mxu0 %v297
      %343 = vmatpush.bf16.msra.mxu0 %v296
      %344 = vmatpush.bf16.msra.mxu0 %v295
      %345 = vmatmul.bf16.gmra.mxu0 %v233
      %v346 = vpop.f32.mrf.mxu0
      %v347 = vadd.f32 %v207, %v346
      %v348 = vpop.f32.mrf.mxu0
      %v349 = vadd.f32 %v207, %v348
      %350 = vmatmul.bf16.gmra.mxu0 %v235
      %v351 = vpop.f32.mrf.mxu0
      %v352 = vadd.f32 %v207, %v351
      %v353 = vpop.f32.mrf.mxu0
      %v354 = vadd.f32 %v207, %v353
      %355 = vmatmul.bf16.gmra.mxu0 %v237
      %v356 = vpop.f32.mrf.mxu0
      %v357 = vadd.f32 %v207, %v356
      %v358 = vpop.f32.mrf.mxu0
      %v359 = vadd.f32 %v207, %v358
      %360 = vmatmul.bf16.gmra.mxu0 %v239
      %v361 = vpop.f32.mrf.mxu0
      %v362 = vadd.f32 %v207, %v361
      %v363 = vpop.f32.mrf.mxu0
      %v364 = vadd.f32 %v207, %v363
      %365 = vdwg.mxu0
      %366 = vmatpush.bf16.msra.mxu0 0
      %367 = vmatpush.bf16.msra.mxu0 0
      %368 = vmatpush.bf16.msra.mxu0 0
      %369 = vmatpush.bf16.msra.mxu0 %v335
      %370 = vmatpush.bf16.msra.mxu0 %v306
      %371 = vmatpush.bf16.msra.mxu0 %v305
      %372 = vmatpush.bf16.msra.mxu0 %v304
      %373 = vmatpush.bf16.msra.mxu0 %v303
      %374 = vmatmul.bf16.gmra.mxu0 %v322
      %v375 = vpop.f32.mrf.mxu0
      %v376 = vadd.f32 %v347, %v375
      %v377 = vpop.f32.mrf.mxu0
      %v378 = vadd.f32 %v349, %v377
      %379 = vmatmul.bf16.gmra.mxu0 %v325
      %v380 = vpop.f32.mrf.mxu0
      %v381 = vadd.f32 %v352, %v380
      %v382 = vpop.f32.mrf.mxu0
      %v383 = vadd.f32 %v354, %v382
      %384 = vmatmul.bf16.gmra.mxu0 %v328
      %v385 = vpop.f32.mrf.mxu0
      %v386 = vadd.f32 %v357, %v385
      %v387 = vpop.f32.mrf.mxu0
      %v388 = vadd.f32 %v359, %v387
      %389 = vmatmul.bf16.gmra.mxu0 %v331
      %v390 = vpop.f32.mrf.mxu0
      %v391 = vadd.f32 %v362, %v390
      %v392 = vpop.f32.mrf.mxu0
      %v393 = vadd.f32 %v364, %v392
      %394 = vdwg.mxu0
      %v395 = vmax.f32 %v376, 0.0
      %v396 = vmax.f32 %v378, 0.0
      %v397 = vmax.f32 %v381, 0.0
      %v398 = vmax.f32 %v383, 0.0
      %v399 = vmax.f32 %v386, 0.0
      %v400 = vmax.f32 %v388, 0.0
      %v401 = vmax.f32 %v391, 0.0
      %v402 = vmax.f32 %v393, 0.0
      %v403 = vmax.f32 %v395, %v397
      %v404 = vmax.f32 %v396, %v398
      %v405 = vmax.f32 %v399, %v401
      %v406 = vmax.f32 %v400, %v402
      %v407 = vmax.f32 %v403, %v405
      %v408 = vmax.f32 %v404, %v406
      %v409 = vpack.c.bf16 %v407, %v407
      %v410 = vpack.c.bf16 %v408, %v408
      %411 = vst [vmem:[%s170] sm:$0xf] %v409
      %412 = vst [vmem:[%s170 + $0x4] sm:$0xf] %v410
      %p413 = scmp.lt.s32.totalorder %s14, 1
      %s414 = scalar_select %p413, %s14, 1
      %s415 = smul.addr %s414, 2
      %s416 = smul.addr %s415, 4
      %s417 = scalar_lea.vmem %s3, %s416
      // Predicated region
      $region33: #{convnet_forward.4} parent=31 // pred_check
        %p418 = pneg %p100
      $region34: #{convnet_forward.4} parent=31 // pred_check_branch
        %420 = sbr.rel (%p418) target = $region36
      $region35: #{convnet_forward.4} parent=31 // pred_region
        _
      $region36: #{convnet_forward.4} parent=31 // pred_fallthru
        _
    $region32: #{convnet_forward.4} parent=5 // pred_fallthru
      _
    %p421 = scmp.le.s32.totalorder 2, %s9
    // Predicated region
    $region37: #{convnet_forward.4} parent=5 // pred_check
      %p422 = pneg %p421
    $region38: #{convnet_forward.4} parent=5 // pred_check_branch
      %424 = sbr.rel (%p422) target = $region40
    $region39: #{convnet_forward.4} parent=5 // pred_region
      %s425 = ssub.s32 %s9, 2
      // Predicated region
      $region41: #{convnet_forward.4} parent=39 // pred_check
        %p426 = pneg %p106
      $region42: #{convnet_forward.4} parent=39 // pred_check_branch
        %428 = sbr.rel (%p426) target = $region44
      $region43: #{convnet_forward.4} parent=39 // pred_region
        %p429 = scmp.lt.s32.totalorder %s15, 1
        %s430 = scalar_select %p429, %s15, 1
        %s431 = smul.addr %s430, 2
        %s432 = smul.addr %s431, 4
        %s433 = scalar_lea.vmem %s3, %s432
      $region44: #{convnet_forward.4} parent=39 // pred_fallthru
        _
    $region40: #{convnet_forward.4} parent=5 // pred_fallthru
      _
  $region6: #{convnet_forward.4} parent=0 // loop_footer
    %s13 = sadd.s32 1, %s9
  $region7: #{convnet_forward.4} parent=0 // loop_footer_branch
    %8 = sbr.rel target = $region3
  $region8: #{convnet_forward.4} parent=0 // loop_exit
    _

// kernel: convnet_forward.5
$region0: #{convnet_forward.5}
  #allocation0 [shape = 'u32[]', space=smem, size = 0x4, offset = 0x4, fixed_abs, tag = 'smem constant byte address 0x4 - core index']
  #allocation1 [shape = 'u32[72,128]{1,0:T(1,128)}', space=vmem, size = 0x9000, scoped, tag = 'internal scratch']
  %s0 = inlined_call_operand.vmem [shape: bf16[8,2048], index: 0, kind: input, shape index: {}]
  %s1 = inlined_call_operand.vmem [shape: bf16[2048,128], index: 1, kind: input, shape index: {}]
  %s2 = inlined_call_operand.vmem [shape: f32[1,128], index: 2, kind: input, shape index: {}]
  %s3 = inlined_call_operand.vmem [shape: bf16[128,128], index: 3, kind: input, shape index: {}]
  %s4 = inlined_call_operand.vmem [shape: f32[1,128], index: 4, kind: input, shape index: {}]
  %s5 = inlined_call_operand.vmem [shape: bf16[128,128], index: 5, kind: input, shape index: {}]
  %s6 = inlined_call_operand.vmem [shape: f32[1,128], index: 6, kind: input, shape index: {}]
  %s7 = inlined_call_operand.vmem [shape: f32[8,128], index: 7, kind: output, shape index: {}]
  %s8 = sld [smem:[#allocation0]]
  $region38: #{convnet_forward.5} parent=0
    _
  %s10 = ssub.s32 1, %s8
  %s11 = scalar_select 0, %s10, %s8
  // Predicated region
  $region2: #{convnet_forward.5} parent=0 // pred_check
    _
  $region3: #{convnet_forward.5} parent=0 // pred_check_branch
    %13 = sbr.rel (0) target = $region5
  $region4: #{convnet_forward.5} parent=0 // pred_region
    _
  $region5: #{convnet_forward.5} parent=0 // pred_fallthru
    _
  // Predicated region
  $region6: #{convnet_forward.5} parent=0 // pred_check
    _
  $region7: #{convnet_forward.5} parent=0 // pred_check_branch
    %15 = sbr.rel (0) target = $region9
  $region8: #{convnet_forward.5} parent=0 // pred_region
    _
  $region9: #{convnet_forward.5} parent=0 // pred_fallthru
    _
  // Predicated region
  $region10: #{convnet_forward.5} parent=0 // pred_check
    _
  $region11: #{convnet_forward.5} parent=0 // pred_check_branch
    %17 = sbr.rel (0) target = $region13
  $region12: #{convnet_forward.5} parent=0 // pred_region
    _
  $region13: #{convnet_forward.5} parent=0 // pred_fallthru
    _
  // Predicated region
  $region14: #{convnet_forward.5} parent=0 // pred_check
    _
  $region15: #{convnet_forward.5} parent=0 // pred_check_branch
    %19 = sbr.rel (0) target = $region17
  $region16: #{convnet_forward.5} parent=0 // pred_region
    _
  $region17: #{convnet_forward.5} parent=0 // pred_fallthru
    _
  // Predicated region
  $region18: #{convnet_forward.5} parent=0 // pred_check
    _
  $region19: #{convnet_forward.5} parent=0 // pred_check_branch
    %21 = sbr.rel (0) target = $region21
  $region20: #{convnet_forward.5} parent=0 // pred_region
    _
  $region21: #{convnet_forward.5} parent=0 // pred_fallthru
    _
  // Predicated region
  $region22: #{convnet_forward.5} parent=0 // pred_check
    _
  $region23: #{convnet_forward.5} parent=0 // pred_check_branch
    %23 = sbr.rel (0) target = $region25
  $region24: #{convnet_forward.5} parent=0 // pred_region
    _
  $region25: #{convnet_forward.5} parent=0 // pred_fallthru
    _
  // Predicated region
  $region26: #{convnet_forward.5} parent=0 // pred_check
    _
  $region27: #{convnet_forward.5} parent=0 // pred_check_branch
    %25 = sbr.rel (0) target = $region29
  $region28: #{convnet_forward.5} parent=0 // pred_region
    _
  $region29: #{convnet_forward.5} parent=0 // pred_fallthru
    _
  %v26 = vld [vmem:[%s0] sm:$0xff]
  %v27 = vld [vmem:[%s0 + $0x8] sm:$0xff]
  %v28 = vld [vmem:[%s0 + $0x10] sm:$0xff]
  %v29 = vld [vmem:[%s0 + $0x18] sm:$0xff]
  %v30 = vld [vmem:[%s0 + $0x20] sm:$0xff]
  %v31 = vld [vmem:[%s0 + $0x28] sm:$0xff]
  %v32 = vld [vmem:[%s0 + $0x30] sm:$0xff]
  %v33 = vld [vmem:[%s0 + $0x38] sm:$0xff]
  %v34 = vld [vmem:[%s1] sm:$0xf]
  %v35 = vld [vmem:[%s1 + $0x4] sm:$0xf]
  %v36 = vld [vmem:[%s1 + $0x8] sm:$0xf]
  %v37 = vld [vmem:[%s1 + $0xc] sm:$0xf]
  %v38 = vld [vmem:[%s1 + $0x10] sm:$0xf]
  %v39 = vld [vmem:[%s1 + $0x14] sm:$0xf]
  %v40 = vld [vmem:[%s1 + $0x18] sm:$0xf]
  %v41 = vld [vmem:[%s1 + $0x1c] sm:$0xf]
  %v42 = vld [vmem:[%s1 + $0x20] sm:$0xf]
  %v43 = vld [vmem:[%s1 + $0x24] sm:$0xf]
  %v44 = vld [vmem:[%s1 + $0x28] sm:$0xf]
  %v45 = vld [vmem:[%s1 + $0x2c] sm:$0xf]
  %v46 = vld [vmem:[%s1 + $0x30] sm:$0xf]
  %v47 = vld [vmem:[%s1 + $0x34] sm:$0xf]
  %v48 = vld [vmem:[%s1 + $0x38] sm:$0xf]
  %v49 = vld [vmem:[%s1 + $0x3c] sm:$0xf]
  %v50 = vld [vmem:[%s1 + $0x40] sm:$0xf]
  %v51 = vld [vmem:[%s1 + $0x44] sm:$0xf]
  %v52 = vld [vmem:[%s1 + $0x48] sm:$0xf]
  %v53 = vld [vmem:[%s1 + $0x4c] sm:$0xf]
  %v54 = vld [vmem:[%s1 + $0x50] sm:$0xf]
  %v55 = vld [vmem:[%s1 + $0x54] sm:$0xf]
  %v56 = vld [vmem:[%s1 + $0x58] sm:$0xf]
  %v57 = vld [vmem:[%s1 + $0x5c] sm:$0xf]
  %v58 = vld [vmem:[%s1 + $0x60] sm:$0xf]
  %v59 = vld [vmem:[%s1 + $0x64] sm:$0xf]
  %v60 = vld [vmem:[%s1 + $0x68] sm:$0xf]
  %v61 = vld [vmem:[%s1 + $0x6c] sm:$0xf]
  %v62 = vld [vmem:[%s1 + $0x70] sm:$0xf]
  %v63 = vld [vmem:[%s1 + $0x74] sm:$0xf]
  %v64 = vld [vmem:[%s1 + $0x78] sm:$0xf]
  %v65 = vld [vmem:[%s1 + $0x7c] sm:$0xf]
  %v66 = vld [vmem:[%s1 + $0x80] sm:$0xf]
  %v67 = vld [vmem:[%s1 + $0x84] sm:$0xf]
  %v68 = vld [vmem:[%s1 + $0x88] sm:$0xf]
  %v69 = vld [vmem:[%s1 + $0x8c] sm:$0xf]
  %v70 = vld [vmem:[%s1 + $0x90] sm:$0xf]
  %v71 = vld [vmem:[%s1 + $0x94] sm:$0xf]
  %v72 = vld [vmem:[%s1 + $0x98] sm:$0xf]
  %v73 = vld [vmem:[%s1 + $0x9c] sm:$0xf]
  %v74 = vld [vmem:[%s1 + $0xa0] sm:$0xf]
  %v75 = vld [vmem:[%s1 + $0xa4] sm:$0xf]
  %v76 = vld [vmem:[%s1 + $0xa8] sm:$0xf]
  %v77 = vld [vmem:[%s1 + $0xac] sm:$0xf]
  %v78 = vld [vmem:[%s1 + $0xb0] sm:$0xf]
  %v79 = vld [vmem:[%s1 + $0xb4] sm:$0xf]
  %v80 = vld [vmem:[%s1 + $0xb8] sm:$0xf]
  %v81 = vld [vmem:[%s1 + $0xbc] sm:$0xf]
  %v82 = vld [vmem:[%s1 + $0xc0] sm:$0xf]
  %v83 = vld [vmem:[%s1 + $0xc4] sm:$0xf]
  %v84 = vld [vmem:[%s1 + $0xc8] sm:$0xf]
  %v85 = vld [vmem:[%s1 + $0xcc] sm:$0xf]
  %v86 = vld [vmem:[%s1 + $0xd0] sm:$0xf]
  %v87 = vld [vmem:[%s1 + $0xd4] sm:$0xf]
  %v88 = vld [vmem:[%s1 + $0xd8] sm:$0xf]
  %v89 = vld [vmem:[%s1 + $0xdc] sm:$0xf]
  %v90 = vld [vmem:[%s1 + $0xe0] sm:$0xf]
  %v91 = vld [vmem:[%s1 + $0xe4] sm:$0xf]
  %v92 = vld [vmem:[%s1 + $0xe8] sm:$0xf]
  %v93 = vld [vmem:[%s1 + $0xec] sm:$0xf]
  %v94 = vld [vmem:[%s1 + $0xf0] sm:$0xf]
  %v95 = vld [vmem:[%s1 + $0xf4] sm:$0xf]
  %v96 = vld [vmem:[%s1 + $0xf8] sm:$0xf]
  %v97 = vld [vmem:[%s1 + $0xfc] sm:$0xf]
  %v98 = vld [vmem:[%s1 + $0x100] sm:$0xf]
  %v99 = vld [vmem:[%s1 + $0x104] sm:$0xf]
  %v100 = vld [vmem:[%s1 + $0x108] sm:$0xf]
  %v101 = vld [vmem:[%s1 + $0x10c] sm:$0xf]
  %v102 = vld [vmem:[%s1 + $0x110] sm:$0xf]
  %v103 = vld [vmem:[%s1 + $0x114] sm:$0xf]
  %v104 = vld [vmem:[%s1 + $0x118] sm:$0xf]
  %v105 = vld [vmem:[%s1 + $0x11c] sm:$0xf]
  %v106 = vld [vmem:[%s1 + $0x120] sm:$0xf]
  %v107 = vld [vmem:[%s1 + $0x124] sm:$0xf]
  %v108 = vld [vmem:[%s1 + $0x128] sm:$0xf]
  %v109 = vld [vmem:[%s1 + $0x12c] sm:$0xf]
  %v110 = vld [vmem:[%s1 + $0x130] sm:$0xf]
  %v111 = vld [vmem:[%s1 + $0x134] sm:$0xf]
  %v112 = vld [vmem:[%s1 + $0x138] sm:$0xf]
  %v113 = vld [vmem:[%s1 + $0x13c] sm:$0xf]
  %v114 = vld [vmem:[%s1 + $0x140] sm:$0xf]
  %v115 = vld [vmem:[%s1 + $0x144] sm:$0xf]
  %v116 = vld [vmem:[%s1 + $0x148] sm:$0xf]
  %v117 = vld [vmem:[%s1 + $0x14c] sm:$0xf]
  %v118 = vld [vmem:[%s1 + $0x150] sm:$0xf]
  %v119 = vld [vmem:[%s1 + $0x154] sm:$0xf]
  %v120 = vld [vmem:[%s1 + $0x158] sm:$0xf]
  %v121 = vld [vmem:[%s1 + $0x15c] sm:$0xf]
  %v122 = vld [vmem:[%s1 + $0x160] sm:$0xf]
  %v123 = vld [vmem:[%s1 + $0x164] sm:$0xf]
  %v124 = vld [vmem:[%s1 + $0x168] sm:$0xf]
  %v125 = vld [vmem:[%s1 + $0x16c] sm:$0xf]
  %v126 = vld [vmem:[%s1 + $0x170] sm:$0xf]
  %v127 = vld [vmem:[%s1 + $0x174] sm:$0xf]
  %v128 = vld [vmem:[%s1 + $0x178] sm:$0xf]
  %v129 = vld [vmem:[%s1 + $0x17c] sm:$0xf]
  %v130 = vld [vmem:[%s1 + $0x180] sm:$0xf]
  %v131 = vld [vmem:[%s1 + $0x184] sm:$0xf]
  %v132 = vld [vmem:[%s1 + $0x188] sm:$0xf]
  %v133 = vld [vmem:[%s1 + $0x18c] sm:$0xf]
  %v134 = vld [vmem:[%s1 + $0x190] sm:$0xf]
  %v135 = vld [vmem:[%s1 + $0x194] sm:$0xf]
  %v136 = vld [vmem:[%s1 + $0x198] sm:$0xf]
  %v137 = vld [vmem:[%s1 + $0x19c] sm:$0xf]
  %v138 = vld [vmem:[%s1 + $0x1a0] sm:$0xf]
  %v139 = vld [vmem:[%s1 + $0x1a4] sm:$0xf]
  %v140 = vld [vmem:[%s1 + $0x1a8] sm:$0xf]
  %v141 = vld [vmem:[%s1 + $0x1ac] sm:$0xf]
  %v142 = vld [vmem:[%s1 + $0x1b0] sm:$0xf]
  %v143 = vld [vmem:[%s1 + $0x1b4] sm:$0xf]
  %v144 = vld [vmem:[%s1 + $0x1b8] sm:$0xf]
  %v145 = vld [vmem:[%s1 + $0x1bc] sm:$0xf]
  %v146 = vld [vmem:[%s1 + $0x1c0] sm:$0xf]
  %v147 = vld [vmem:[%s1 + $0x1c4] sm:$0xf]
  %v148 = vld [vmem:[%s1 + $0x1c8] sm:$0xf]
  %v149 = vld [vmem:[%s1 + $0x1cc] sm:$0xf]
  %v150 = vld [vmem:[%s1 + $0x1d0] sm:$0xf]
  %v151 = vld [vmem:[%s1 + $0x1d4] sm:$0xf]
  %v152 = vld [vmem:[%s1 + $0x1d8] sm:$0xf]
  %v153 = vld [vmem:[%s1 + $0x1dc] sm:$0xf]
  %v154 = vld [vmem:[%s1 + $0x1e0] sm:$0xf]
  %v155 = vld [vmem:[%s1 + $0x1e4] sm:$0xf]
  %v156 = vld [vmem:[%s1 + $0x1e8] sm:$0xf]
  %v157 = vld [vmem:[%s1 + $0x1ec] sm:$0xf]
  %v158 = vld [vmem:[%s1 + $0x1f0] sm:$0xf]
  %v159 = vld [vmem:[%s1 + $0x1f4] sm:$0xf]
  %v160 = vld [vmem:[%s1 + $0x1f8] sm:$0xf]
  %v161 = vld [vmem:[%s1 + $0x1fc] sm:$0xf]
  %v162 = vld [vmem:[%s1 + $0x200] sm:$0xf]
  %v163 = vld [vmem:[%s1 + $0x204] sm:$0xf]
  %v164 = vld [vmem:[%s1 + $0x208] sm:$0xf]
  %v165 = vld [vmem:[%s1 + $0x20c] sm:$0xf]
  %v166 = vld [vmem:[%s1 + $0x210] sm:$0xf]
  %v167 = vld [vmem:[%s1 + $0x214] sm:$0xf]
  %v168 = vld [vmem:[%s1 + $0x218] sm:$0xf]
  %v169 = vld [vmem:[%s1 + $0x21c] sm:$0xf]
  %v170 = vld [vmem:[%s1 + $0x220] sm:$0xf]
  %v171 = vld [vmem:[%s1 + $0x224] sm:$0xf]
  %v172 = vld [vmem:[%s1 + $0x228] sm:$0xf]
  %v173 = vld [vmem:[%s1 + $0x22c] sm:$0xf]
  %v174 = vld [vmem:[%s1 + $0x230] sm:$0xf]
  %v175 = vld [vmem:[%s1 + $0x234] sm:$0xf]
  %v176 = vld [vmem:[%s1 + $0x238] sm:$0xf]
  %v177 = vld [vmem:[%s1 + $0x23c] sm:$0xf]
  %v178 = vld [vmem:[%s1 + $0x240] sm:$0xf]
  %v179 = vld [vmem:[%s1 + $0x244] sm:$0xf]
  %v180 = vld [vmem:[%s1 + $0x248] sm:$0xf]
  %v181 = vld [vmem:[%s1 + $0x24c] sm:$0xf]
  %v182 = vld [vmem:[%s1 + $0x250] sm:$0xf]
  %v183 = vld [vmem:[%s1 + $0x254] sm:$0xf]
  %v184 = vld [vmem:[%s1 + $0x258] sm:$0xf]
  %v185 = vld [vmem:[%s1 + $0x25c] sm:$0xf]
  %v186 = vld [vmem:[%s1 + $0x260] sm:$0xf]
  %v187 = vld [vmem:[%s1 + $0x264] sm:$0xf]
  %v188 = vld [vmem:[%s1 + $0x268] sm:$0xf]
  %v189 = vld [vmem:[%s1 + $0x26c] sm:$0xf]
  %v190 = vld [vmem:[%s1 + $0x270] sm:$0xf]
  %v191 = vld [vmem:[%s1 + $0x274] sm:$0xf]
  %v192 = vld [vmem:[%s1 + $0x278] sm:$0xf]
  %v193 = vld [vmem:[%s1 + $0x27c] sm:$0xf]
  %v194 = vld [vmem:[%s1 + $0x280] sm:$0xf]
  %v195 = vld [vmem:[%s1 + $0x284] sm:$0xf]
  %v196 = vld [vmem:[%s1 + $0x288] sm:$0xf]
  %v197 = vld [vmem:[%s1 + $0x28c] sm:$0xf]
  %v198 = vld [vmem:[%s1 + $0x290] sm:$0xf]
  %v199 = vld [vmem:[%s1 + $0x294] sm:$0xf]
  %v200 = vld [vmem:[%s1 + $0x298] sm:$0xf]
  %v201 = vld [vmem:[%s1 + $0x29c] sm:$0xf]
  %v202 = vld [vmem:[%s1 + $0x2a0] sm:$0xf]
  %v203 = vld [vmem:[%s1 + $0x2a4] sm:$0xf]
  %v204 = vld [vmem:[%s1 + $0x2a8] sm:$0xf]
  %v205 = vld [vmem:[%s1 + $0x2ac] sm:$0xf]
  %v206 = vld [vmem:[%s1 + $0x2b0] sm:$0xf]
  %v207 = vld [vmem:[%s1 + $0x2b4] sm:$0xf]
  %v208 = vld [vmem:[%s1 + $0x2b8] sm:$0xf]
  %v209 = vld [vmem:[%s1 + $0x2bc] sm:$0xf]
  %v210 = vld [vmem:[%s1 + $0x2c0] sm:$0xf]
  %v211 = vld [vmem:[%s1 + $0x2c4] sm:$0xf]
  %v212 = vld [vmem:[%s1 + $0x2c8] sm:$0xf]
  %v213 = vld [vmem:[%s1 + $0x2cc] sm:$0xf]
  %v214 = vld [vmem:[%s1 + $0x2d0] sm:$0xf]
  %v215 = vld [vmem:[%s1 + $0x2d4] sm:$0xf]
  %v216 = vld [vmem:[%s1 + $0x2d8] sm:$0xf]
  %v217 = vld [vmem:[%s1 + $0x2dc] sm:$0xf]
  %v218 = vld [vmem:[%s1 + $0x2e0] sm:$0xf]
  %v219 = vld [vmem:[%s1 + $0x2e4] sm:$0xf]
  %v220 = vld [vmem:[%s1 + $0x2e8] sm:$0xf]
  %v221 = vld [vmem:[%s1 + $0x2ec] sm:$0xf]
  %v222 = vld [vmem:[%s1 + $0x2f0] sm:$0xf]
  %v223 = vld [vmem:[%s1 + $0x2f4] sm:$0xf]
  %v224 = vld [vmem:[%s1 + $0x2f8] sm:$0xf]
  %v225 = vld [vmem:[%s1 + $0x2fc] sm:$0xf]
  %v226 = vld [vmem:[%s1 + $0x300] sm:$0xf]
  %v227 = vld [vmem:[%s1 + $0x304] sm:$0xf]
  %v228 = vld [vmem:[%s1 + $0x308] sm:$0xf]
  %v229 = vld [vmem:[%s1 + $0x30c] sm:$0xf]
  %v230 = vld [vmem:[%s1 + $0x310] sm:$0xf]
  %v231 = vld [vmem:[%s1 + $0x314] sm:$0xf]
  %v232 = vld [vmem:[%s1 + $0x318] sm:$0xf]
  %v233 = vld [vmem:[%s1 + $0x31c] sm:$0xf]
  %v234 = vld [vmem:[%s1 + $0x320] sm:$0xf]
  %v235 = vld [vmem:[%s1 + $0x324] sm:$0xf]
  %v236 = vld [vmem:[%s1 + $0x328] sm:$0xf]
  %v237 = vld [vmem:[%s1 + $0x32c] sm:$0xf]
  %v238 = vld [vmem:[%s1 + $0x330] sm:$0xf]
  %v239 = vld [vmem:[%s1 + $0x334] sm:$0xf]
  %v240 = vld [vmem:[%s1 + $0x338] sm:$0xf]
  %v241 = vld [vmem:[%s1 + $0x33c] sm:$0xf]
  %v242 = vld [vmem:[%s1 + $0x340] sm:$0xf]
  %v243 = vld [vmem:[%s1 + $0x344] sm:$0xf]
  %v244 = vld [vmem:[%s1 + $0x348] sm:$0xf]
  %v245 = vld [vmem:[%s1 + $0x34c] sm:$0xf]
  %v246 = vld [vmem:[%s1 + $0x350] sm:$0xf]
  %v247 = vld [vmem:[%s1 + $0x354] sm:$0xf]
  %v248 = vld [vmem:[%s1 + $0x358] sm:$0xf]
  %v249 = vld [vmem:[%s1 + $0x35c] sm:$0xf]
  %v250 = vld [vmem:[%s1 + $0x360] sm:$0xf]
  %v251 = vld [vmem:[%s1 + $0x364] sm:$0xf]
  %v252 = vld [vmem:[%s1 + $0x368] sm:$0xf]
  %v253 = vld [vmem:[%s1 + $0x36c] sm:$0xf]
  %v254 = vld [vmem:[%s1 + $0x370] sm:$0xf]
  %v255 = vld [vmem:[%s1 + $0x374] sm:$0xf]
  %v256 = vld [vmem:[%s1 + $0x378] sm:$0xf]
  %v257 = vld [vmem:[%s1 + $0x37c] sm:$0xf]
  %v258 = vld [vmem:[%s1 + $0x380] sm:$0xf]
  %v259 = vld [vmem:[%s1 + $0x384] sm:$0xf]
  %v260 = vld [vmem:[%s1 + $0x388] sm:$0xf]
  %v261 = vld [vmem:[%s1 + $0x38c] sm:$0xf]
  %v262 = vld [vmem:[%s1 + $0x390] sm:$0xf]
  %v263 = vld [vmem:[%s1 + $0x394] sm:$0xf]
  %v264 = vld [vmem:[%s1 + $0x398] sm:$0xf]
  %v265 = vld [vmem:[%s1 + $0x39c] sm:$0xf]
  %v266 = vld [vmem:[%s1 + $0x3a0] sm:$0xf]
  %v267 = vld [vmem:[%s1 + $0x3a4] sm:$0xf]
  %v268 = vld [vmem:[%s1 + $0x3a8] sm:$0xf]
  %v269 = vld [vmem:[%s1 + $0x3ac] sm:$0xf]
  %v270 = vld [vmem:[%s1 + $0x3b0] sm:$0xf]
  %v271 = vld [vmem:[%s1 + $0x3b4] sm:$0xf]
  %v272 = vld [vmem:[%s1 + $0x3b8] sm:$0xf]
  %v273 = vld [vmem:[%s1 + $0x3bc] sm:$0xf]
  %v274 = vld [vmem:[%s1 + $0x3c0] sm:$0xf]
  %v275 = vld [vmem:[%s1 + $0x3c4] sm:$0xf]
  %v276 = vld [vmem:[%s1 + $0x3c8] sm:$0xf]
  %v277 = vld [vmem:[%s1 + $0x3cc] sm:$0xf]
  %v278 = vld [vmem:[%s1 + $0x3d0] sm:$0xf]
  %v279 = vld [vmem:[%s1 + $0x3d4] sm:$0xf]
  %v280 = vld [vmem:[%s1 + $0x3d8] sm:$0xf]
  %v281 = vld [vmem:[%s1 + $0x3dc] sm:$0xf]
  %v282 = vld [vmem:[%s1 + $0x3e0] sm:$0xf]
  %v283 = vld [vmem:[%s1 + $0x3e4] sm:$0xf]
  %v284 = vld [vmem:[%s1 + $0x3e8] sm:$0xf]
  %v285 = vld [vmem:[%s1 + $0x3ec] sm:$0xf]
  %v286 = vld [vmem:[%s1 + $0x3f0] sm:$0xf]
  %v287 = vld [vmem:[%s1 + $0x3f4] sm:$0xf]
  %v288 = vld [vmem:[%s1 + $0x3f8] sm:$0xf]
  %v289 = vld [vmem:[%s1 + $0x3fc] sm:$0xf]
  %v290 = vld [vmem:[%s2] sm:$0x1]
  %v292 = vperm.slane %v290, 0
  %v302 = vunpack.c.l.b16 %v26
  %v303 = vunpack.c.h.b16 %v26
  %v304 = vunpack.c.l.b16 %v27
  %v305 = vunpack.c.h.b16 %v27
  %v306 = vunpack.c.l.b16 %v28
  %v307 = vunpack.c.h.b16 %v28
  %v308 = vunpack.c.l.b16 %v29
  %v309 = vunpack.c.h.b16 %v29
  %v310 = vunpack.c.l.b16 %v30
  %v311 = vunpack.c.h.b16 %v30
  %v312 = vunpack.c.l.b16 %v31
  %v313 = vunpack.c.h.b16 %v31
  %v314 = vunpack.c.l.b16 %v32
  %v315 = vunpack.c.h.b16 %v32
  %v316 = vunpack.c.l.b16 %v33
  %v317 = vunpack.c.h.b16 %v33
  %v318 = vpack.c.b16 %v302, %v302
  %v319 = vpack.c.b16 %v303, %v303
  %v320 = vpack.c.b16 %v304, %v304
  %v321 = vpack.c.b16 %v305, %v305
  %v322 = vpack.c.b16 %v306, %v306
  %v323 = vpack.c.b16 %v307, %v307
  %v324 = vpack.c.b16 %v308, %v308
  %v325 = vpack.c.b16 %v309, %v309
  %v326 = vpack.c.b16 %v310, %v310
  %v327 = vpack.c.b16 %v311, %v311
  %v328 = vpack.c.b16 %v312, %v312
  %v329 = vpack.c.b16 %v313, %v313
  %v330 = vpack.c.b16 %v314, %v314
  %v331 = vpack.c.b16 %v315, %v315
  %v332 = vpack.c.b16 %v316, %v316
  %v333 = vpack.c.b16 %v317, %v317
  %v606 = vunpack.c.l.b16 %v34
  %v607 = vunpack.c.l.b16 %v35
  %v608 = vunpack.c.l.b16 %v36
  %v609 = vunpack.c.l.b16 %v37
  %v610 = vunpack.c.l.b16 %v38
  %v611 = vunpack.c.l.b16 %v39
  %v612 = vunpack.c.l.b16 %v40
  %v613 = vunpack.c.l.b16 %v41
  %v614 = vunpack.c.l.b16 %v42
  %v615 = vunpack.c.l.b16 %v43
  %v616 = vunpack.c.l.b16 %v44
  %v617 = vunpack.c.l.b16 %v45
  %v618 = vunpack.c.l.b16 %v46
  %v619 = vunpack.c.l.b16 %v47
  %v620 = vunpack.c.l.b16 %v48
  %v621 = vunpack.c.l.b16 %v49
  %v622 = vunpack.c.l.b16 %v50
  %v623 = vunpack.c.l.b16 %v51
  %v624 = vunpack.c.l.b16 %v52
  %v625 = vunpack.c.l.b16 %v53
  %v626 = vunpack.c.l.b16 %v54
  %v627 = vunpack.c.l.b16 %v55
  %v628 = vunpack.c.l.b16 %v56
  %v629 = vunpack.c.l.b16 %v57
  %v630 = vunpack.c.l.b16 %v58
  %v631 = vunpack.c.l.b16 %v59
  %v632 = vunpack.c.l.b16 %v60
  %v633 = vunpack.c.l.b16 %v61
  %v634 = vunpack.c.l.b16 %v62
  %v635 = vunpack.c.l.b16 %v63
  %v636 = vunpack.c.l.b16 %v64
  %v637 = vunpack.c.l.b16 %v65
  %v638 = vunpack.c.l.b16 %v66
  %v639 = vunpack.c.l.b16 %v67
  %v640 = vunpack.c.l.b16 %v68
  %v641 = vunpack.c.l.b16 %v69
  %v642 = vunpack.c.l.b16 %v70
  %v643 = vunpack.c.l.b16 %v71
  %v644 = vunpack.c.l.b16 %v72
  %v645 = vunpack.c.l.b16 %v73
  %v646 = vunpack.c.l.b16 %v74
  %v647 = vunpack.c.l.b16 %v75
  %v648 = vunpack.c.l.b16 %v76
  %v649 = vunpack.c.l.b16 %v77
  %v650 = vunpack.c.l.b16 %v78
  %v651 = vunpack.c.l.b16 %v79
  %v652 = vunpack.c.l.b16 %v80
  %v653 = vunpack.c.l.b16 %v81
  %v654 = vunpack.c.l.b16 %v82
  %v655 = vunpack.c.l.b16 %v83
  %v656 = vunpack.c.l.b16 %v84
  %v657 = vunpack.c.l.b16 %v85
  %v658 = vunpack.c.l.b16 %v86
  %v659 = vunpack.c.l.b16 %v87
  %v660 = vunpack.c.l.b16 %v88
  %v661 = vunpack.c.l.b16 %v89
  %v662 = vunpack.c.l.b16 %v90
  %v663 = vunpack.c.l.b16 %v91
  %v664 = vunpack.c.l.b16 %v92
  %v665 = vunpack.c.l.b16 %v93
  %v666 = vunpack.c.l.b16 %v94
  %v667 = vunpack.c.l.b16 %v95
  %v668 = vunpack.c.l.b16 %v96
  %v669 = vunpack.c.l.b16 %v97
  %v670 = vunpack.c.l.b16 %v98
  %v671 = vunpack.c.l.b16 %v99
  %v672 = vunpack.c.l.b16 %v100
  %v673 = vunpack.c.l.b16 %v101
  %v674 = vunpack.c.l.b16 %v102
  %v675 = vunpack.c.l.b16 %v103
  %v676 = vunpack.c.l.b16 %v104
  %v677 = vunpack.c.l.b16 %v105
  %v678 = vunpack.c.l.b16 %v106
  %v679 = vunpack.c.l.b16 %v107
  %v680 = vunpack.c.l.b16 %v108
  %v681 = vunpack.c.l.b16 %v109
  %v682 = vunpack.c.l.b16 %v110
  %v683 = vunpack.c.l.b16 %v111
  %v684 = vunpack.c.l.b16 %v112
  %v685 = vunpack.c.l.b16 %v113
  %v686 = vunpack.c.l.b16 %v114
  %v687 = vunpack.c.l.b16 %v115
  %v688 = vunpack.c.l.b16 %v116
  %v689 = vunpack.c.l.b16 %v117
  %v690 = vunpack.c.l.b16 %v118
  %v691 = vunpack.c.l.b16 %v119
  %v692 = vunpack.c.l.b16 %v120
  %v693 = vunpack.c.l.b16 %v121
  %v694 = vunpack.c.l.b16 %v122
  %v695 = vunpack.c.l.b16 %v123
  %v696 = vunpack.c.l.b16 %v124
  %v697 = vunpack.c.l.b16 %v125
  %v698 = vunpack.c.l.b16 %v126
  %v699 = vunpack.c.l.b16 %v127
  %v700 = vunpack.c.l.b16 %v128
  %v701 = vunpack.c.l.b16 %v129
  %v702 = vunpack.c.l.b16 %v130
  %v703 = vunpack.c.l.b16 %v131
  %v704 = vunpack.c.l.b16 %v132
  %v705 = vunpack.c.l.b16 %v133
  %v706 = vunpack.c.l.b16 %v134
  %v707 = vunpack.c.l.b16 %v135
  %v708 = vunpack.c.l.b16 %v136
  %v709 = vunpack.c.l.b16 %v137
  %v710 = vunpack.c.l.b16 %v138
  %v711 = vunpack.c.l.b16 %v139
  %v712 = vunpack.c.l.b16 %v140
  %v713 = vunpack.c.l.b16 %v141
  %v714 = vunpack.c.l.b16 %v142
  %v715 = vunpack.c.l.b16 %v143
  %v716 = vunpack.c.l.b16 %v144
  %v717 = vunpack.c.l.b16 %v145
  %v718 = vunpack.c.l.b16 %v146
  %v719 = vunpack.c.l.b16 %v147
  %v720 = vunpack.c.l.b16 %v148
  %v721 = vunpack.c.l.b16 %v149
  %v722 = vunpack.c.l.b16 %v150
  %v723 = vunpack.c.l.b16 %v151
  %v724 = vunpack.c.l.b16 %v152
  %v725 = vunpack.c.l.b16 %v153
  %v726 = vunpack.c.l.b16 %v154
  %v727 = vunpack.c.l.b16 %v155
  %v728 = vunpack.c.l.b16 %v156
  %v729 = vunpack.c.l.b16 %v157
  %v730 = vunpack.c.l.b16 %v158
  %v731 = vunpack.c.l.b16 %v159
  %v732 = vunpack.c.l.b16 %v160
  %v733 = vunpack.c.l.b16 %v161
  %v734 = vunpack.c.l.b16 %v162
  %v735 = vunpack.c.l.b16 %v163
  %v736 = vunpack.c.l.b16 %v164
  %v737 = vunpack.c.l.b16 %v165
  %v738 = vunpack.c.l.b16 %v166
  %v739 = vunpack.c.l.b16 %v167
  %v740 = vunpack.c.l.b16 %v168
  %v741 = vunpack.c.l.b16 %v169
  %v742 = vunpack.c.l.b16 %v170
  %v743 = vunpack.c.l.b16 %v171
  %v744 = vunpack.c.l.b16 %v172
  %v745 = vunpack.c.l.b16 %v173
  %v746 = vunpack.c.l.b16 %v174
  %v747 = vunpack.c.l.b16 %v175
  %v748 = vunpack.c.l.b16 %v176
  %v749 = vunpack.c.l.b16 %v177
  %v750 = vunpack.c.l.b16 %v178
  %v751 = vunpack.c.l.b16 %v179
  %v752 = vunpack.c.l.b16 %v180
  %v753 = vunpack.c.l.b16 %v181
  %v754 = vunpack.c.l.b16 %v182
  %v755 = vunpack.c.l.b16 %v183
  %v756 = vunpack.c.l.b16 %v184
  %v757 = vunpack.c.l.b16 %v185
  %v758 = vunpack.c.l.b16 %v186
  %v759 = vunpack.c.l.b16 %v187
  %v760 = vunpack.c.l.b16 %v188
  %v761 = vunpack.c.l.b16 %v189
  %v762 = vunpack.c.l.b16 %v190
  %v763 = vunpack.c.l.b16 %v191
  %v764 = vunpack.c.l.b16 %v192
  %v765 = vunpack.c.l.b16 %v193
  %v766 = vunpack.c.l.b16 %v194
  %v767 = vunpack.c.l.b16 %v195
  %v768 = vunpack.c.l.b16 %v196
  %v769 = vunpack.c.l.b16 %v197
  %v770 = vunpack.c.l.b16 %v198
  %v771 = vunpack.c.l.b16 %v199
  %v772 = vunpack.c.l.b16 %v200
  %v773 = vunpack.c.l.b16 %v201
  %v774 = vunpack.c.l.b16 %v202
  %v775 = vunpack.c.l.b16 %v203
  %v776 = vunpack.c.l.b16 %v204
  %v777 = vunpack.c.l.b16 %v205
  %v778 = vunpack.c.l.b16 %v206
  %v779 = vunpack.c.l.b16 %v207
  %v780 = vunpack.c.l.b16 %v208
  %v781 = vunpack.c.l.b16 %v209
  %v782 = vunpack.c.l.b16 %v210
  %v783 = vunpack.c.l.b16 %v211
  %v784 = vunpack.c.l.b16 %v212
  %v785 = vunpack.c.l.b16 %v213
  %v786 = vunpack.c.l.b16 %v214
  %v787 = vunpack.c.l.b16 %v215
  %v788 = vunpack.c.l.b16 %v216
  %v789 = vunpack.c.l.b16 %v217
  %v790 = vunpack.c.l.b16 %v218
  %v791 = vunpack.c.l.b16 %v219
  %v792 = vunpack.c.l.b16 %v220
  %v793 = vunpack.c.l.b16 %v221
  %v794 = vunpack.c.l.b16 %v222
  %v795 = vunpack.c.l.b16 %v223
  %v796 = vunpack.c.l.b16 %v224
  %v797 = vunpack.c.l.b16 %v225
  %v798 = vunpack.c.l.b16 %v226
  %v799 = vunpack.c.l.b16 %v227
  %v800 = vunpack.c.l.b16 %v228
  %v801 = vunpack.c.l.b16 %v229
  %v802 = vunpack.c.l.b16 %v230
  %v803 = vunpack.c.l.b16 %v231
  %v804 = vunpack.c.l.b16 %v232
  %v805 = vunpack.c.l.b16 %v233
  %v806 = vunpack.c.l.b16 %v234
  %v807 = vunpack.c.l.b16 %v235
  %v808 = vunpack.c.l.b16 %v236
  %v809 = vunpack.c.l.b16 %v237
  %v810 = vunpack.c.l.b16 %v238
  %v811 = vunpack.c.l.b16 %v239
  %v812 = vunpack.c.l.b16 %v240
  %v813 = vunpack.c.l.b16 %v241
  %v814 = vunpack.c.l.b16 %v242
  %v815 = vunpack.c.l.b16 %v243
  %v816 = vunpack.c.l.b16 %v244
  %v817 = vunpack.c.l.b16 %v245
  %v818 = vunpack.c.l.b16 %v246
  %v819 = vunpack.c.l.b16 %v247
  %v820 = vunpack.c.l.b16 %v248
  %v821 = vunpack.c.l.b16 %v249
  %v822 = vunpack.c.l.b16 %v250
  %v823 = vunpack.c.l.b16 %v251
  %v824 = vunpack.c.l.b16 %v252
  %v825 = vunpack.c.l.b16 %v253
  %v826 = vunpack.c.l.b16 %v254
  %v827 = vunpack.c.l.b16 %v255
  %v828 = vunpack.c.l.b16 %v256
  %v829 = vunpack.c.l.b16 %v257
  %v830 = vunpack.c.l.b16 %v258
  %v831 = vunpack.c.l.b16 %v259
  %v832 = vunpack.c.l.b16 %v260
  %v833 = vunpack.c.l.b16 %v261
  %v834 = vunpack.c.l.b16 %v262
  %v835 = vunpack.c.l.b16 %v263
  %v836 = vunpack.c.l.b16 %v264
  %v837 = vunpack.c.l.b16 %v265
  %v838 = vunpack.c.l.b16 %v266
  %v839 = vunpack.c.l.b16 %v267
  %v840 = vunpack.c.l.b16 %v268
  %v841 = vunpack.c.l.b16 %v269
  %v842 = vunpack.c.l.b16 %v270
  %v843 = vunpack.c.l.b16 %v271
  %v844 = vunpack.c.l.b16 %v272
  %v845 = vunpack.c.l.b16 %v273
  %v846 = vunpack.c.l.b16 %v274
  %v847 = vunpack.c.l.b16 %v275
  %v848 = vunpack.c.l.b16 %v276
  %v849 = vunpack.c.l.b16 %v277
  %v850 = vunpack.c.l.b16 %v278
  %v851 = vunpack.c.l.b16 %v279
  %v852 = vunpack.c.l.b16 %v280
  %v853 = vunpack.c.l.b16 %v281
  %v854 = vunpack.c.l.b16 %v282
  %v855 = vunpack.c.l.b16 %v283
  %v856 = vunpack.c.l.b16 %v284
  %v857 = vunpack.c.l.b16 %v285
  %v858 = vunpack.c.l.b16 %v286
  %v859 = vunpack.c.l.b16 %v287
  %v860 = vunpack.c.l.b16 %v288
  %v861 = vunpack.c.l.b16 %v289
  %v862 = vpack.c.b16 %v607, %v606
  %v863 = vpack.c.b16 %v609, %v608
  %v864 = vpack.c.b16 %v611, %v610
  %v865 = vpack.c.b16 %v613, %v612
  %v866 = vpack.c.b16 %v615, %v614
  %v867 = vpack.c.b16 %v617, %v616
  %v868 = vpack.c.b16 %v619, %v618
  %v869 = vpack.c.b16 %v621, %v620
  %v870 = vpack.c.b16 %v623, %v622
  %v871 = vpack.c.b16 %v625, %v624
  %v872 = vpack.c.b16 %v627, %v626
  %v873 = vpack.c.b16 %v629, %v628
  %v874 = vpack.c.b16 %v631, %v630
  %v875 = vpack.c.b16 %v633, %v632
  %v876 = vpack.c.b16 %v635, %v634
  %v877 = vpack.c.b16 %v637, %v636
  %v878 = vpack.c.b16 %v639, %v638
  %v879 = vpack.c.b16 %v641, %v640
  %v880 = vpack.c.b16 %v643, %v642
  %v881 = vpack.c.b16 %v645, %v644
  %v882 = vpack.c.b16 %v647, %v646
  %v883 = vpack.c.b16 %v649, %v648
  %v884 = vpack.c.b16 %v651, %v650
  %v885 = vpack.c.b16 %v653, %v652
  %v886 = vpack.c.b16 %v655, %v654
  %v887 = vpack.c.b16 %v657, %v656
  %v888 = vpack.c.b16 %v659, %v658
  %v889 = vpack.c.b16 %v661, %v660
  %v890 = vpack.c.b16 %v663, %v662
  %v891 = vpack.c.b16 %v665, %v664
  %v892 = vpack.c.b16 %v667, %v666
  %v893 = vpack.c.b16 %v669, %v668
  %v894 = vpack.c.b16 %v671, %v670
  %v895 = vpack.c.b16 %v673, %v672
  %v896 = vpack.c.b16 %v675, %v674
  %v897 = vpack.c.b16 %v677, %v676
  %v898 = vpack.c.b16 %v679, %v678
  %v899 = vpack.c.b16 %v681, %v680
  %v900 = vpack.c.b16 %v683, %v682
  %v901 = vpack.c.b16 %v685, %v684
  %v902 = vpack.c.b16 %v687, %v686
  %v903 = vpack.c.b16 %v689, %v688
  %v904 = vpack.c.b16 %v691, %v690
  %v905 = vpack.c.b16 %v693, %v692
  %v906 = vpack.c.b16 %v695, %v694
  %v907 = vpack.c.b16 %v697, %v696
  %v908 = vpack.c.b16 %v699, %v698
  %v909 = vpack.c.b16 %v701, %v700
  %v910 = vpack.c.b16 %v703, %v702
  %v911 = vpack.c.b16 %v705, %v704
  %v912 = vpack.c.b16 %v707, %v706
  %v913 = vpack.c.b16 %v709, %v708
  %v914 = vpack.c.b16 %v711, %v710
  %v915 = vpack.c.b16 %v713, %v712
  %v916 = vpack.c.b16 %v715, %v714
  %v917 = vpack.c.b16 %v717, %v716
  %v918 = vpack.c.b16 %v719, %v718
  %v919 = vpack.c.b16 %v721, %v720
  %v920 = vpack.c.b16 %v723, %v722
  %v921 = vpack.c.b16 %v725, %v724
  %v922 = vpack.c.b16 %v727, %v726
  %v923 = vpack.c.b16 %v729, %v728
  %v924 = vpack.c.b16 %v731, %v730
  %v925 = vpack.c.b16 %v733, %v732
  %v926 = vpack.c.b16 %v735, %v734
  %v927 = vpack.c.b16 %v737, %v736
  %v928 = vpack.c.b16 %v739, %v738
  %v929 = vpack.c.b16 %v741, %v740
  %v930 = vpack.c.b16 %v743, %v742
  %v931 = vpack.c.b16 %v745, %v744
  %v932 = vpack.c.b16 %v747, %v746
  %v933 = vpack.c.b16 %v749, %v748
  %v934 = vpack.c.b16 %v751, %v750
  %v935 = vpack.c.b16 %v753, %v752
  %v936 = vpack.c.b16 %v755, %v754
  %v937 = vpack.c.b16 %v757, %v756
  %v938 = vpack.c.b16 %v759, %v758
  %v939 = vpack.c.b16 %v761, %v760
  %v940 = vpack.c.b16 %v763, %v762
  %v941 = vpack.c.b16 %v765, %v764
  %v942 = vpack.c.b16 %v767, %v766
  %v943 = vpack.c.b16 %v769, %v768
  %v944 = vpack.c.b16 %v771, %v770
  %v945 = vpack.c.b16 %v773, %v772
  %v946 = vpack.c.b16 %v775, %v774
  %v947 = vpack.c.b16 %v777, %v776
  %v948 = vpack.c.b16 %v779, %v778
  %v949 = vpack.c.b16 %v781, %v780
  %v950 = vpack.c.b16 %v783, %v782
  %v951 = vpack.c.b16 %v785, %v784
  %v952 = vpack.c.b16 %v787, %v786
  %v953 = vpack.c.b16 %v789, %v788
  %v954 = vpack.c.b16 %v791, %v790
  %v955 = vpack.c.b16 %v793, %v792
  %v956 = vpack.c.b16 %v795, %v794
  %v957 = vpack.c.b16 %v797, %v796
  %v958 = vpack.c.b16 %v799, %v798
  %v959 = vpack.c.b16 %v801, %v800
  %v960 = vpack.c.b16 %v803, %v802
  %v961 = vpack.c.b16 %v805, %v804
  %v962 = vpack.c.b16 %v807, %v806
  %v963 = vpack.c.b16 %v809, %v808
  %v964 = vpack.c.b16 %v811, %v810
  %v965 = vpack.c.b16 %v813, %v812
  %v966 = vpack.c.b16 %v815, %v814
  %v967 = vpack.c.b16 %v817, %v816
  %v968 = vpack.c.b16 %v819, %v818
  %v969 = vpack.c.b16 %v821, %v820
  %v970 = vpack.c.b16 %v823, %v822
  %v971 = vpack.c.b16 %v825, %v824
  %v972 = vpack.c.b16 %v827, %v826
  %v973 = vpack.c.b16 %v829, %v828
  %v974 = vpack.c.b16 %v831, %v830
  %v975 = vpack.c.b16 %v833, %v832
  %v976 = vpack.c.b16 %v835, %v834
  %v977 = vpack.c.b16 %v837, %v836
  %v978 = vpack.c.b16 %v839, %v838
  %v979 = vpack.c.b16 %v841, %v840
  %v980 = vpack.c.b16 %v843, %v842
  %v981 = vpack.c.b16 %v845, %v844
  %v982 = vpack.c.b16 %v847, %v846
  %v983 = vpack.c.b16 %v849, %v848
  %v984 = vpack.c.b16 %v851, %v850
  %v985 = vpack.c.b16 %v853, %v852
  %v986 = vpack.c.b16 %v855, %v854
  %v987 = vpack.c.b16 %v857, %v856
  %v988 = vpack.c.b16 %v859, %v858
  %v989 = vpack.c.b16 %v861, %v860
  %1118 = vmatpush.bf16.msra.mxu0 %v869
  %1119 = vmatpush.bf16.msra.mxu0 %v868
  %1120 = vmatpush.bf16.msra.mxu0 %v867
  %1121 = vmatpush.bf16.msra.mxu0 %v866
  %1122 = vmatpush.bf16.msra.mxu0 %v865
  %1123 = vmatpush.bf16.msra.mxu0 %v864
  %1124 = vmatpush.bf16.msra.mxu0 %v863
  %1125 = vmatpush.bf16.msra.mxu0 %v862
  %1126 = vmatmul.bf16.gmra.mxu0 %v318
  %v1127 = vpop.f32.mrf.mxu0
  %v1128 = vadd.f32 %v292, %v1127
  %v1129 = vpop.f32.mrf.mxu0
  %1130 = vdwg.mxu0
  %1131 = vmatpush.bf16.msra.mxu0 %v877
  %1132 = vmatpush.bf16.msra.mxu0 %v876
  %1133 = vmatpush.bf16.msra.mxu0 %v875
  %1134 = vmatpush.bf16.msra.mxu0 %v874
  %1135 = vmatpush.bf16.msra.mxu0 %v873
  %1136 = vmatpush.bf16.msra.mxu0 %v872
  %1137 = vmatpush.bf16.msra.mxu0 %v871
  %1138 = vmatpush.bf16.msra.mxu0 %v870
  %1139 = vmatmul.bf16.gmra.mxu0 %v319
  %v1140 = vpop.f32.mrf.mxu0
  %v1141 = vadd.f32 %v1128, %v1140
  %v1142 = vpop.f32.mrf.mxu0
  %1143 = vdwg.mxu0
  %1144 = vmatpush.bf16.msra.mxu0 %v885
  %1145 = vmatpush.bf16.msra.mxu0 %v884
  %1146 = vmatpush.bf16.msra.mxu0 %v883
  %1147 = vmatpush.bf16.msra.mxu0 %v882
  %1148 = vmatpush.bf16.msra.mxu0 %v881
  %1149 = vmatpush.bf16.msra.mxu0 %v880
  %1150 = vmatpush.bf16.msra.mxu0 %v879
  %1151 = vmatpush.bf16.msra.mxu0 %v878
  %1152 = vmatmul.bf16.gmra.mxu0 %v320
  %v1153 = vpop.f32.mrf.mxu0
  %v1154 = vadd.f32 %v1141, %v1153
  %v1155 = vpop.f32.mrf.mxu0
  %1156 = vdwg.mxu0
  %1157 = vmatpush.bf16.msra.mxu0 %v893
  %1158 = vmatpush.bf16.msra.mxu0 %v892
  %1159 = vmatpush.bf16.msra.mxu0 %v891
  %1160 = vmatpush.bf16.msra.mxu0 %v890
  %1161 = vmatpush.bf16.msra.mxu0 %v889
  %1162 = vmatpush.bf16.msra.mxu0 %v888
  %1163 = vmatpush.bf16.msra.mxu0 %v887
  %1164 = vmatpush.bf16.msra.mxu0 %v886
  %1165 = vmatmul.bf16.gmra.mxu0 %v321
  %v1166 = vpop.f32.mrf.mxu0
  %v1167 = vadd.f32 %v1154, %v1166
  %v1168 = vpop.f32.mrf.mxu0
  %1169 = vdwg.mxu0
  %1170 = vmatpush.bf16.msra.mxu0 %v901
  %1171 = vmatpush.bf16.msra.mxu0 %v900
  %1172 = vmatpush.bf16.msra.mxu0 %v899
  %1173 = vmatpush.bf16.msra.mxu0 %v898
  %1174 = vmatpush.bf16.msra.mxu0 %v897
  %1175 = vmatpush.bf16.msra.mxu0 %v896
  %1176 = vmatpush.bf16.msra.mxu0 %v895
  %1177 = vmatpush.bf16.msra.mxu0 %v894
  %1178 = vmatmul.bf16.gmra.mxu0 %v322
  %v1179 = vpop.f32.mrf.mxu0
  %v1180 = vadd.f32 %v1167, %v1179
  %v1181 = vpop.f32.mrf.mxu0
  %1182 = vdwg.mxu0
  %1183 = vmatpush.bf16.msra.mxu0 %v909
  %1184 = vmatpush.bf16.msra.mxu0 %v908
  %1185 = vmatpush.bf16.msra.mxu0 %v907
  %1186 = vmatpush.bf16.msra.mxu0 %v906
  %1187 = vmatpush.bf16.msra.mxu0 %v905
  %1188 = vmatpush.bf16.msra.mxu0 %v904
  %1189 = vmatpush.bf16.msra.mxu0 %v903
  %1190 = vmatpush.bf16.msra.mxu0 %v902
  %1191 = vmatmul.bf16.gmra.mxu0 %v323
  %v1192 = vpop.f32.mrf.mxu0
  %v1193 = vadd.f32 %v1180, %v1192
  %v1194 = vpop.f32.mrf.mxu0
  %1195 = vdwg.mxu0
  %1196 = vmatpush.bf16.msra.mxu0 %v917
  %1197 = vmatpush.bf16.msra.mxu0 %v916
  %1198 = vmatpush.bf16.msra.mxu0 %v915
  %1199 = vmatpush.bf16.msra.mxu0 %v914
  %1200 = vmatpush.bf16.msra.mxu0 %v913
  %1201 = vmatpush.bf16.msra.mxu0 %v912
  %1202 = vmatpush.bf16.msra.mxu0 %v911
  %1203 = vmatpush.bf16.msra.mxu0 %v910
  %1204 = vmatmul.bf16.gmra.mxu0 %v324
  %v1205 = vpop.f32.mrf.mxu0
  %v1206 = vadd.f32 %v1193, %v1205
  %v1207 = vpop.f32.mrf.mxu0
  %1208 = vdwg.mxu0
  %1209 = vmatpush.bf16.msra.mxu0 %v925
  %1210 = vmatpush.bf16.msra.mxu0 %v924
  %1211 = vmatpush.bf16.msra.mxu0 %v923
  %1212 = vmatpush.bf16.msra.mxu0 %v922
  %1213 = vmatpush.bf16.msra.mxu0 %v921
  %1214 = vmatpush.bf16.msra.mxu0 %v920
  %1215 = vmatpush.bf16.msra.mxu0 %v919
  %1216 = vmatpush.bf16.msra.mxu0 %v918
  %1217 = vmatmul.bf16.gmra.mxu0 %v325
  %v1218 = vpop.f32.mrf.mxu0
  %v1219 = vadd.f32 %v1206, %v1218
  %v1220 = vpop.f32.mrf.mxu0
  %1221 = vdwg.mxu0
  %1222 = vmatpush.bf16.msra.mxu0 %v933
  %1223 = vmatpush.bf16.msra.mxu0 %v932
  %1224 = vmatpush.bf16.msra.mxu0 %v931
  %1225 = vmatpush.bf16.msra.mxu0 %v930
  %1226 = vmatpush.bf16.msra.mxu0 %v929
  %1227 = vmatpush.bf16.msra.mxu0 %v928
  %1228 = vmatpush.bf16.msra.mxu0 %v927
  %1229 = vmatpush.bf16.msra.mxu0 %v926
  %1230 = vmatmul.bf16.gmra.mxu0 %v326
  %v1231 = vpop.f32.mrf.mxu0
  %v1232 = vadd.f32 %v1219, %v1231
  %v1233 = vpop.f32.mrf.mxu0
  %1234 = vdwg.mxu0
  %1235 = vmatpush.bf16.msra.mxu0 %v941
  %1236 = vmatpush.bf16.msra.mxu0 %v940
  %1237 = vmatpush.bf16.msra.mxu0 %v939
  %1238 = vmatpush.bf16.msra.mxu0 %v938
  %1239 = vmatpush.bf16.msra.mxu0 %v937
  %1240 = vmatpush.bf16.msra.mxu0 %v936
  %1241 = vmatpush.bf16.msra.mxu0 %v935
  %1242 = vmatpush.bf16.msra.mxu0 %v934
  %1243 = vmatmul.bf16.gmra.mxu0 %v327
  %v1244 = vpop.f32.mrf.mxu0
  %v1245 = vadd.f32 %v1232, %v1244
  %v1246 = vpop.f32.mrf.mxu0
  %1247 = vdwg.mxu0
  %1248 = vmatpush.bf16.msra.mxu0 %v949
  %1249 = vmatpush.bf16.msra.mxu0 %v948
  %1250 = vmatpush.bf16.msra.mxu0 %v947
  %1251 = vmatpush.bf16.msra.mxu0 %v946
  %1252 = vmatpush.bf16.msra.mxu0 %v945
  %1253 = vmatpush.bf16.msra.mxu0 %v944
  %1254 = vmatpush.bf16.msra.mxu0 %v943
  %1255 = vmatpush.bf16.msra.mxu0 %v942
  %1256 = vmatmul.bf16.gmra.mxu0 %v328
  %v1257 = vpop.f32.mrf.mxu0
  %v1258 = vadd.f32 %v1245, %v1257
  %v1259 = vpop.f32.mrf.mxu0
  %1260 = vdwg.mxu0
  %1261 = vmatpush.bf16.msra.mxu0 %v957
  %1262 = vmatpush.bf16.msra.mxu0 %v956
  %1263 = vmatpush.bf16.msra.mxu0 %v955
  %1264 = vmatpush.bf16.msra.mxu0 %v954
  %1265 = vmatpush.bf16.msra.mxu0 %v953
  %1266 = vmatpush.bf16.msra.mxu0 %v952
  %1267 = vmatpush.bf16.msra.mxu0 %v951
  %1268 = vmatpush.bf16.msra.mxu0 %v950
  %1269 = vmatmul.bf16.gmra.mxu0 %v329
  %v1270 = vpop.f32.mrf.mxu0
  %v1271 = vadd.f32 %v1258, %v1270
  %v1272 = vpop.f32.mrf.mxu0
  %1273 = vdwg.mxu0
  %1274 = vmatpush.bf16.msra.mxu0 %v965
  %1275 = vmatpush.bf16.msra.mxu0 %v964
  %1276 = vmatpush.bf16.msra.mxu0 %v963
  %1277 = vmatpush.bf16.msra.mxu0 %v962
  %1278 = vmatpush.bf16.msra.mxu0 %v961
  %1279 = vmatpush.bf16.msra.mxu0 %v960
  %1280 = vmatpush.bf16.msra.mxu0 %v959
  %1281 = vmatpush.bf16.msra.mxu0 %v958
  %1282 = vmatmul.bf16.gmra.mxu0 %v330
  %v1283 = vpop.f32.mrf.mxu0
  %v1284 = vadd.f32 %v1271, %v1283
  %v1285 = vpop.f32.mrf.mxu0
  %1286 = vdwg.mxu0
  %1287 = vmatpush.bf16.msra.mxu0 %v973
  %1288 = vmatpush.bf16.msra.mxu0 %v972
  %1289 = vmatpush.bf16.msra.mxu0 %v971
  %1290 = vmatpush.bf16.msra.mxu0 %v970
  %1291 = vmatpush.bf16.msra.mxu0 %v969
  %1292 = vmatpush.bf16.msra.mxu0 %v968
  %1293 = vmatpush.bf16.msra.mxu0 %v967
  %1294 = vmatpush.bf16.msra.mxu0 %v966
  %1295 = vmatmul.bf16.gmra.mxu0 %v331
  %v1296 = vpop.f32.mrf.mxu0
  %v1297 = vadd.f32 %v1284, %v1296
  %v1298 = vpop.f32.mrf.mxu0
  %1299 = vdwg.mxu0
  %1300 = vmatpush.bf16.msra.mxu0 %v981
  %1301 = vmatpush.bf16.msra.mxu0 %v980
  %1302 = vmatpush.bf16.msra.mxu0 %v979
  %1303 = vmatpush.bf16.msra.mxu0 %v978
  %1304 = vmatpush.bf16.msra.mxu0 %v977
  %1305 = vmatpush.bf16.msra.mxu0 %v976
  %1306 = vmatpush.bf16.msra.mxu0 %v975
  %1307 = vmatpush.bf16.msra.mxu0 %v974
  %1308 = vmatmul.bf16.gmra.mxu0 %v332
  %v1309 = vpop.f32.mrf.mxu0
  %v1310 = vadd.f32 %v1297, %v1309
  %v1311 = vpop.f32.mrf.mxu0
  %1312 = vdwg.mxu0
  %1313 = vmatpush.bf16.msra.mxu0 %v989
  %1314 = vmatpush.bf16.msra.mxu0 %v988
  %1315 = vmatpush.bf16.msra.mxu0 %v987
  %1316 = vmatpush.bf16.msra.mxu0 %v986
  %1317 = vmatpush.bf16.msra.mxu0 %v985
  %1318 = vmatpush.bf16.msra.mxu0 %v984
  %1319 = vmatpush.bf16.msra.mxu0 %v983
  %1320 = vmatpush.bf16.msra.mxu0 %v982
  %1321 = vmatmul.bf16.gmra.mxu0 %v333
  %v1322 = vpop.f32.mrf.mxu0
  %v1323 = vadd.f32 %v1310, %v1322
  %v1324 = vpop.f32.mrf.mxu0
  %1325 = vdwg.mxu0
  %v1326 = vmax.f32 %v1323, 0.0
  %v1327 = vpack.c.bf16 %v1326, %v1326
  %v1328 = vld [vmem:[%s3] sm:$0xf]
  %v1329 = vld [vmem:[%s3 + $0x4] sm:$0xf]
  %v1330 = vld [vmem:[%s3 + $0x8] sm:$0xf]
  %v1331 = vld [vmem:[%s3 + $0xc] sm:$0xf]
  %v1332 = vld [vmem:[%s3 + $0x10] sm:$0xf]
  %v1333 = vld [vmem:[%s3 + $0x14] sm:$0xf]
  %v1334 = vld [vmem:[%s3 + $0x18] sm:$0xf]
  %v1335 = vld [vmem:[%s3 + $0x1c] sm:$0xf]
  %v1336 = vld [vmem:[%s3 + $0x20] sm:$0xf]
  %v1337 = vld [vmem:[%s3 + $0x24] sm:$0xf]
  %v1338 = vld [vmem:[%s3 + $0x28] sm:$0xf]
  %v1339 = vld [vmem:[%s3 + $0x2c] sm:$0xf]
  %v1340 = vld [vmem:[%s3 + $0x30] sm:$0xf]
  %v1341 = vld [vmem:[%s3 + $0x34] sm:$0xf]
  %v1342 = vld [vmem:[%s3 + $0x38] sm:$0xf]
  %v1343 = vld [vmem:[%s3 + $0x3c] sm:$0xf]
  %v1344 = vld [vmem:[%s4] sm:$0x1]
  %v1346 = vperm.slane %v1344, 0
  %v1364 = vunpack.c.l.b16 %v1328
  %v1365 = vunpack.c.l.b16 %v1329
  %v1366 = vunpack.c.l.b16 %v1330
  %v1367 = vunpack.c.l.b16 %v1331
  %v1368 = vunpack.c.l.b16 %v1332
  %v1369 = vunpack.c.l.b16 %v1333
  %v1370 = vunpack.c.l.b16 %v1334
  %v1371 = vunpack.c.l.b16 %v1335
  %v1372 = vunpack.c.l.b16 %v1336
  %v1373 = vunpack.c.l.b16 %v1337
  %v1374 = vunpack.c.l.b16 %v1338
  %v1375 = vunpack.c.l.b16 %v1339
  %v1376 = vunpack.c.l.b16 %v1340
  %v1377 = vunpack.c.l.b16 %v1341
  %v1378 = vunpack.c.l.b16 %v1342
  %v1379 = vunpack.c.l.b16 %v1343
  %v1380 = vpack.c.b16 %v1365, %v1364
  %v1381 = vpack.c.b16 %v1367, %v1366
  %v1382 = vpack.c.b16 %v1369, %v1368
  %v1383 = vpack.c.b16 %v1371, %v1370
  %v1384 = vpack.c.b16 %v1373, %v1372
  %v1385 = vpack.c.b16 %v1375, %v1374
  %v1386 = vpack.c.b16 %v1377, %v1376
  %v1387 = vpack.c.b16 %v1379, %v1378
  %1396 = vmatpush.bf16.msra.mxu0 %v1387
  %1397 = vmatpush.bf16.msra.mxu0 %v1386
  %1398 = vmatpush.bf16.msra.mxu0 %v1385
  %1399 = vmatpush.bf16.msra.mxu0 %v1384
  %1400 = vmatpush.bf16.msra.mxu0 %v1383
  %1401 = vmatpush.bf16.msra.mxu0 %v1382
  %1402 = vmatpush.bf16.msra.mxu0 %v1381
  %1403 = vmatpush.bf16.msra.mxu0 %v1380
  %1404 = vmatmul.bf16.gmra.mxu0 %v1327
  %v1405 = vpop.f32.mrf.mxu0
  %v1406 = vadd.f32 %v1346, %v1405
  %v1407 = vpop.f32.mrf.mxu0
  %1408 = vdwg.mxu0
  %v1409 = vmax.f32 %v1406, 0.0
  %v1410 = vpack.c.bf16 %v1409, %v1409
  %v1411 = vld [vmem:[%s5] sm:$0xf]
  %v1412 = vld [vmem:[%s5 + $0x4] sm:$0xf]
  %v1413 = vld [vmem:[%s5 + $0x8] sm:$0xf]
  %v1414 = vld [vmem:[%s5 + $0xc] sm:$0xf]
  %v1415 = vld [vmem:[%s5 + $0x10] sm:$0xf]
  %v1416 = vld [vmem:[%s5 + $0x14] sm:$0xf]
  %v1417 = vld [vmem:[%s5 + $0x18] sm:$0xf]
  %v1418 = vld [vmem:[%s5 + $0x1c] sm:$0xf]
  %v1419 = vld [vmem:[%s5 + $0x20] sm:$0xf]
  %v1420 = vld [vmem:[%s5 + $0x24] sm:$0xf]
  %v1421 = vld [vmem:[%s5 + $0x28] sm:$0xf]
  %v1422 = vld [vmem:[%s5 + $0x2c] sm:$0xf]
  %v1423 = vld [vmem:[%s5 + $0x30] sm:$0xf]
  %v1424 = vld [vmem:[%s5 + $0x34] sm:$0xf]
  %v1425 = vld [vmem:[%s5 + $0x38] sm:$0xf]
  %v1426 = vld [vmem:[%s5 + $0x3c] sm:$0xf]
  %v1427 = vld [vmem:[%s6] sm:$0x1]
  %v1429 = vperm.slane %v1427, 0
  %v1447 = vunpack.c.l.b16 %v1411
  %v1448 = vunpack.c.l.b16 %v1412
  %v1449 = vunpack.c.l.b16 %v1413
  %v1450 = vunpack.c.l.b16 %v1414
  %v1451 = vunpack.c.l.b16 %v1415
  %v1452 = vunpack.c.l.b16 %v1416
  %v1453 = vunpack.c.l.b16 %v1417
  %v1454 = vunpack.c.l.b16 %v1418
  %v1455 = vunpack.c.l.b16 %v1419
  %v1456 = vunpack.c.l.b16 %v1420
  %v1457 = vunpack.c.l.b16 %v1421
  %v1458 = vunpack.c.l.b16 %v1422
  %v1459 = vunpack.c.l.b16 %v1423
  %v1460 = vunpack.c.l.b16 %v1424
  %v1461 = vunpack.c.l.b16 %v1425
  %v1462 = vunpack.c.l.b16 %v1426
  %v1463 = vpack.c.b16 %v1448, %v1447
  %v1464 = vpack.c.b16 %v1450, %v1449
  %v1465 = vpack.c.b16 %v1452, %v1451
  %v1466 = vpack.c.b16 %v1454, %v1453
  %v1467 = vpack.c.b16 %v1456, %v1455
  %v1468 = vpack.c.b16 %v1458, %v1457
  %v1469 = vpack.c.b16 %v1460, %v1459
  %v1470 = vpack.c.b16 %v1462, %v1461
  %1479 = vmatpush.bf16.msra.mxu0 %v1470
  %1480 = vmatpush.bf16.msra.mxu0 %v1469
  %1481 = vmatpush.bf16.msra.mxu0 %v1468
  %1482 = vmatpush.bf16.msra.mxu0 %v1467
  %1483 = vmatpush.bf16.msra.mxu0 %v1466
  %1484 = vmatpush.bf16.msra.mxu0 %v1465
  %1485 = vmatpush.bf16.msra.mxu0 %v1464
  %1486 = vmatpush.bf16.msra.mxu0 %v1463
  %1487 = vmatmul.bf16.gmra.mxu0 %v1410
  %v1488 = vpop.f32.mrf.mxu0
  %v1489 = vadd.f32 %v1429, %v1488
  %v1490 = vpop.f32.mrf.mxu0
  %1491 = vdwg.mxu0
  %1492 = vst [vmem:[%s7] sm:$0xff] %v1489
  // Predicated region
  $region30: #{convnet_forward.5} parent=0 // pred_check
    _
  $region31: #{convnet_forward.5} parent=0 // pred_check_branch
    %1494 = sbr.rel (0) target = $region33
  $region32: #{convnet_forward.5} parent=0 // pred_region
    _
  $region33: #{convnet_forward.5} parent=0 // pred_fallthru
    _
  // Predicated region
  $region34: #{convnet_forward.5} parent=0 // pred_check
    _
  $region35: #{convnet_forward.5} parent=0 // pred_check_branch
    %1496 = sbr.rel (0) target = $region37
  $region36: #{convnet_forward.5} parent=0 // pred_region
    _
  $region37: #{convnet_forward.5} parent=0 // pred_fallthru
    _

</llo_original>
